<compile_context>
chip_gen: v7x
topology: tpu7x:2x2x1
jax: 0.10.0
libtpu: 0.0.40
codegen_flags: <defaults>
</compile_context>

<pallas_src>
import jax
import jax.numpy as jnp
from jax.experimental import pallas as pl
from jax.experimental.pallas import tpu as pltpu

CONV_OUT = 32
HIDDEN = 64
KH, KW = 6, 4
BN_EPS = 1e-5

# ---- packed-weight row offsets (all multiples of 8 -> sublane-aligned slices)
# pk32 : lane width 32
_PK32_CONV_W = 0      # rows 0:24    conv weight as (24, 32)
_PK32_CONV_B = 24     # row 24       conv bias
_PK32_W1F    = 32     # rows 32:96   fc1 weight, forward-hidden half (64, 32)
_PK32_W1B    = 96     # rows 96:160  fc1 weight, reverse-hidden half (64, 32)
_PK32_B1     = 160    # row 160      fc1 bias
_PK32_ROWS   = 168
# pk256 : lane width 256 (fused LSTM gates, PyTorch order [i|f|g|o])
_PKL_WIH_F = 0        # rows 0:32    forward w_ih^T  (BN folded in)
_PKL_B_F   = 32       # row 32       forward fused bias (BN folded in)
_PKL_WHH_F = 40       # rows 40:104  forward w_hh^T
_PKL_WIH_B = 104      # rows 104:136 reverse w_ih^T  (BN folded in)
_PKL_B_B   = 136      # row 136      reverse fused bias
_PKL_ROWS  = 144
# pk8 : lane width 8
_PKH_W2   = 0         # rows 0:32    fc2 weight (32, 8)
_PKH_B2   = 32        # row 32       fc2 bias
_PKH_W3   = 40        # rows 40:48   fc3 weight (8, 2) in cols 0:2
_PKH_B3   = 48        # row 48       fc3 bias in cols 0:2
_PKH_ROWS = 56


# -------------------- single fused kernel --------------------------------------
def _make_kernel(B, BP, T):
    """B: real batch, BP: batch padded to the 8-row sublane tile, T: seq len."""
    bf16 = jnp.bfloat16
    f32 = jnp.float32

    def kernel(p_ref, w32_ref, w256_ref, w8_ref, o_ref):
        # ---- Conv2d(1,32,(6,4)) + ReLU: one im2col matmul (patches prebuilt) --
        w_conv = w32_ref[_PK32_CONV_W:_PK32_CONV_W + KH * KW, :].astype(bf16)  # (24,32)
        b_conv = w32_ref[_PK32_CONV_B:_PK32_CONV_B + 1, :]                     # (1,32)
        conv = jnp.dot(p_ref[...], w_conv, preferred_element_type=f32) + b_conv
        conv = jnp.maximum(conv, 0.0)                        # (T*9*BP, 32)

        # ---- MaxPool1d(3) x2 == max over aligned 9-windows; layout is already
        #      time-major with BP rows per step, so this is relayout-free.
        pooled = jnp.max(conv.reshape(T, 9, BP, CONV_OUT), axis=1)   # (T, BP, 32)
        x_stack = pooled.reshape(T * BP, CONV_OUT)           # row = t*BP + b
        # BatchNorm1d(eval) is folded into wih / bias below (exact).

        # ---- forward LSTM: fused gates [i|f|g|o], x-projection hoisted --------
        wih_f = w256_ref[_PKL_WIH_F:_PKL_WIH_F + CONV_OUT, :].astype(bf16)     # (32,256)
        b_f   = w256_ref[_PKL_B_F:_PKL_B_F + 1, :]                             # (1,256)
        whh_f = w256_ref[_PKL_WHH_F:_PKL_WHH_F + HIDDEN, :].astype(bf16)       # (64,256)
        xw = jnp.dot(x_stack.astype(bf16), wih_f,
                     preferred_element_type=f32) + b_f       # (T*BP, 256)

        h = jnp.zeros((BP, HIDDEN), f32)
        c = jnp.zeros((BP, HIDDEN), f32)
        for t in range(T):                                   # fully unrolled (T static)
            g = xw[t * BP:(t + 1) * BP] + jnp.dot(h.astype(bf16), whh_f,
                                                  preferred_element_type=f32)
            # sigmoid(x) = 0.5*tanh(0.5x)+0.5: one full-width EUP op covers i/f/o
            s = 0.5 * jnp.tanh(0.5 * g) + 0.5                # (BP, 256)
            i_g = s[:, 0:HIDDEN]
            f_g = s[:, HIDDEN:2 * HIDDEN]
            o_g = s[:, 3 * HIDDEN:4 * HIDDEN]
            g_g = jnp.tanh(g[:, 2 * HIDDEN:3 * HIDDEN])      # aligned slice at 128
            c = f_g * c + i_g * g_g
            h = o_g * jnp.tanh(c)
        h_fwd = h

        # ---- reverse LSTM: the head only reads lstm_out[:, -1, H:], i.e. the
        # reverse hidden at the LAST position, which processes only x[T-1]
        # starting from the zero state -> exactly one cell step (h0=c0=0 kills
        # the h@Whh and forget-gate terms; both biases are still added).
        # NOTE: this shortcut breaks if the head ever reads more than the last
        # time step of the reverse direction.
        wih_b = w256_ref[_PKL_WIH_B:_PKL_WIH_B + CONV_OUT, :].astype(bf16)     # (32,256)
        b_b   = w256_ref[_PKL_B_B:_PKL_B_B + 1, :]                             # (1,256)
        x_last = x_stack[(T - 1) * BP:T * BP]                # (BP, 32), aligned
        gb = jnp.dot(x_last.astype(bf16), wih_b, preferred_element_type=f32) + b_b
        sb = 0.5 * jnp.tanh(0.5 * gb) + 0.5
        i_b = sb[:, 0:HIDDEN]
        o_b = sb[:, 3 * HIDDEN:4 * HIDDEN]
        g_b = jnp.tanh(gb[:, 2 * HIDDEN:3 * HIDDEN])
        h_bwd = o_b * jnp.tanh(i_b * g_b)

        # ---- FC head; fc1 on concat([h_fwd, h_bwd]) as a split matmul ---------
        w1f = w32_ref[_PK32_W1F:_PK32_W1F + HIDDEN, :].astype(bf16)            # (64,32)
        w1b = w32_ref[_PK32_W1B:_PK32_W1B + HIDDEN, :].astype(bf16)            # (64,32)
        b1  = w32_ref[_PK32_B1:_PK32_B1 + 1, :]                                # (1,32)
        z1 = jnp.maximum(
            jnp.dot(h_fwd.astype(bf16), w1f, preferred_element_type=f32)
            + jnp.dot(h_bwd.astype(bf16), w1b, preferred_element_type=f32)
            + b1, 0.0)
        # Dropout(p=0.2) is identity in eval mode.
        w2 = w8_ref[_PKH_W2:_PKH_W2 + 32, :].astype(bf16)                      # (32,8)
        b2 = w8_ref[_PKH_B2:_PKH_B2 + 1, :]                                    # (1,8)
        z2 = jnp.maximum(
            jnp.dot(z1.astype(bf16), w2, preferred_element_type=f32) + b2, 0.0)
        w3 = w8_ref[_PKH_W3:_PKH_W3 + 8, 0:2].astype(bf16)                     # (8,2)
        b3 = w8_ref[_PKH_B3:_PKH_B3 + 1, 0:2]                                  # (1,2)
        out = jnp.dot(z2.astype(bf16), w3, preferred_element_type=f32) + b3    # (BP,2)
        o_ref[...] = out[0:B, :]                              # drop batch padding

    return kernel


def _vmem_specs(n):
    return [pl.BlockSpec(memory_space=pltpu.MemorySpace.VMEM) for _ in range(n)]


# -------------------- parameters (deterministic, PyTorch-shaped) ---------------
def init_params(key):
    ks = jax.random.split(key, 20)

    def u(k, shape, fan_in):
        bound = 1.0 / (fan_in ** 0.5)
        return jax.random.uniform(k, shape, jnp.float32, -bound, bound)

    p = {}
    p["conv_w"] = u(ks[0], (CONV_OUT, 1, KH, KW), KH * KW)      # Conv2d(1, 32, (6,4))
    p["conv_b"] = u(ks[1], (CONV_OUT,), KH * KW)
    p["bn_gamma"] = jnp.ones((CONV_OUT,), jnp.float32)          # BatchNorm1d(32) eval
    p["bn_beta"] = jnp.zeros((CONV_OUT,), jnp.float32)
    p["bn_mean"] = jnp.zeros((CONV_OUT,), jnp.float32)
    p["bn_var"] = jnp.ones((CONV_OUT,), jnp.float32)
    for d, name in enumerate(["f", "b"]):                       # bidirectional LSTM
        p[f"w_ih_{name}"] = u(ks[2 + 4 * d], (4 * HIDDEN, CONV_OUT), HIDDEN)
        p[f"w_hh_{name}"] = u(ks[3 + 4 * d], (4 * HIDDEN, HIDDEN), HIDDEN)
        p[f"b_ih_{name}"] = u(ks[4 + 4 * d], (4 * HIDDEN,), HIDDEN)
        p[f"b_hh_{name}"] = u(ks[5 + 4 * d], (4 * HIDDEN,), HIDDEN)
    p["fc1_w"] = u(ks[10], (32, 128), 128)                      # Linear(128, 32)
    p["fc1_b"] = u(ks[11], (32,), 128)
    p["fc2_w"] = u(ks[12], (8, 32), 32)                         # Linear(32, 8)
    p["fc2_b"] = u(ks[13], (8,), 32)
    p["fc3_w"] = u(ks[14], (2, 8), 8)                           # Linear(8, 2)
    p["fc3_b"] = u(ks[15], (2,), 8)
    return p


# -------------------- one-time weight preprocessing -----------------------------
def prepare_params(p):
    """Fold BN, fuse LSTM gates, transpose, and pack into 3 arrays (once)."""
    bn_scale = p["bn_gamma"] / jnp.sqrt(p["bn_var"] + BN_EPS)   # (32,)
    bn_shift = p["bn_beta"] - p["bn_mean"] * bn_scale           # (32,)

    # --- lane-width-32 pack: conv matmul weight/bias + fc1 split ---------------
    w_conv = p["conv_w"][:, 0].reshape(CONV_OUT, KH * KW).T     # (24, 32)
    w1 = p["fc1_w"].T                                           # (128, 32)
    pk32 = jnp.zeros((_PK32_ROWS, CONV_OUT), jnp.float32)
    pk32 = pk32.at[_PK32_CONV_W:_PK32_CONV_W + KH * KW].set(w_conv)
    pk32 = pk32.at[_PK32_CONV_B].set(p["conv_b"])
    pk32 = pk32.at[_PK32_W1F:_PK32_W1F + HIDDEN].set(w1[:HIDDEN])
    pk32 = pk32.at[_PK32_W1B:_PK32_W1B + HIDDEN].set(w1[HIDDEN:])
    pk32 = pk32.at[_PK32_B1].set(p["fc1_b"])

    # --- lane-width-256 pack: LSTM (BN folded into the input projection) -------
    # (pool*scale + shift) @ Wih^T == pool @ (diag(scale)Wih^T) + shift@Wih^T
    def fold(w_ih, b_ih, b_hh):
        wihT = w_ih.T                                           # (32, 256)
        return bn_scale[:, None] * wihT, b_ih + b_hh + bn_shift @ wihT

    wih_f, b_f = fold(p["w_ih_f"], p["b_ih_f"], p["b_hh_f"])
    wih_b, b_b = fold(p["w_ih_b"], p["b_ih_b"], p["b_hh_b"])
    pk256 = jnp.zeros((_PKL_ROWS, 4 * HIDDEN), jnp.float32)
    pk256 = pk256.at[_PKL_WIH_F:_PKL_WIH_F + CONV_OUT].set(wih_f)
    pk256 = pk256.at[_PKL_B_F].set(b_f)
    pk256 = pk256.at[_PKL_WHH_F:_PKL_WHH_F + HIDDEN].set(p["w_hh_f"].T)
    pk256 = pk256.at[_PKL_WIH_B:_PKL_WIH_B + CONV_OUT].set(wih_b)
    pk256 = pk256.at[_PKL_B_B].set(b_b)

    # --- lane-width-8 pack: fc2 / fc3 -------------------------------------------
    pk8 = jnp.zeros((_PKH_ROWS, 8), jnp.float32)
    pk8 = pk8.at[_PKH_W2:_PKH_W2 + 32].set(p["fc2_w"].T)        # (32, 8)
    pk8 = pk8.at[_PKH_B2].set(p["fc2_b"])
    pk8 = pk8.at[_PKH_W3:_PKH_W3 + 8, 0:2].set(p["fc3_w"].T)    # (8, 2)
    pk8 = pk8.at[_PKH_B3, 0:2].set(p["fc3_b"])

    return {"pk32": pk32, "pk256": pk256, "pk8": pk8}


# -------------------- forward (single fused pallas_call) ------------------------
def cnn_lstm_v3_forward(prep, dna):
    dna = dna.astype(jnp.float32)
    B, Cin, H, W = dna.shape
    assert Cin == 1 and W == KW, "module expects (B, 1, H, 4) input"
    Hout = H - KH + 1
    T = Hout // 9            # MaxPool1d(3) twice == max over aligned 9-windows
    assert T >= 1, "need H >= 14 so the pooled sequence has at least one step"
    BP = 8 * ((B + 7) // 8)  # batch padded to the 8-row sublane tile

    # ---- wrapper-side layout plumbing (XLA): im2col + time-major + batch pad ---
    x = dna[:, 0]                                             # (B, H, 4)
    cols = [x[:, i:i + 9 * T, :] for i in range(KH)]          # 6 x (B, 9T, 4)
    patches = jnp.concatenate(cols, axis=-1)                  # (B, 9T, 24)
    patches = jnp.transpose(patches, (1, 0, 2))               # (9T, B, 24)
    patches = jnp.pad(patches, ((0, 0), (0, BP - B), (0, 0))) # (9T, BP, 24)
    patches = patches.reshape(9 * T * BP, KH * KW).astype(jnp.bfloat16)

    return pl.pallas_call(
        _make_kernel(B, BP, T),
        out_shape=jax.ShapeDtypeStruct((B, 2), jnp.float32),
        in_specs=_vmem_specs(4),
        out_specs=pl.BlockSpec(memory_space=pltpu.MemorySpace.VMEM),
    )(patches, prep["pk32"], prep["pk256"], prep["pk8"])


# -------------------- pure-JAX reference (for correctness check) ----------------
def reference_forward(params, dna):
    dna = dna.astype(jnp.float32)
    B, _, H, W = dna.shape
    Hout = H - KH + 1
    x2 = dna[:, 0]
    w = params["conv_w"][:, 0]                                 # (32, 6, 4)
    patches = jnp.stack([x2[:, i:i + Hout, :] for i in range(KH)], axis=2)
    conv = jnp.einsum("bhkw,ckw->bch", patches, w) + params["conv_b"][None, :, None]
    conv = jnp.maximum(conv, 0.0)                              # (B, 32, Hout)
    L = Hout
    L1 = L // 3
    p1 = conv[:, :, :L1 * 3].reshape(B, CONV_OUT, L1, 3).max(-1)
    L2 = L1 // 3
    p2 = p1[:, :, :L2 * 3].reshape(B, CONV_OUT, L2, 3).max(-1)
    bnv = (p2 - params["bn_mean"][None, :, None]) / jnp.sqrt(params["bn_var"][None, :, None] + BN_EPS)
    bnv = bnv * params["bn_gamma"][None, :, None] + params["bn_beta"][None, :, None]
    x_seq = jnp.transpose(bnv, (0, 2, 1))                      # (B, T, 32)

    def lstm_dir(xs, w_ih, w_hh, b_ih, b_hh):
        Bq, T, _ = xs.shape
        h = jnp.zeros((Bq, HIDDEN)); c = jnp.zeros((Bq, HIDDEN))
        hs = []
        for t in range(T):
            g = xs[:, t] @ w_ih.T + h @ w_hh.T + b_ih + b_hh
            i = jax.nn.sigmoid(g[:, :HIDDEN])
            f = jax.nn.sigmoid(g[:, HIDDEN:2 * HIDDEN])
            gg = jnp.tanh(g[:, 2 * HIDDEN:3 * HIDDEN])
            o = jax.nn.sigmoid(g[:, 3 * HIDDEN:])
            c = f * c + i * gg
            h = o * jnp.tanh(c)
            hs.append(h)
        return jnp.stack(hs, axis=1)

    hf = lstm_dir(x_seq, params["w_ih_f"], params["w_hh_f"], params["b_ih_f"], params["b_hh_f"])
    hb = lstm_dir(x_seq[:, ::-1], params["w_ih_b"], params["w_hh_b"],
                  params["b_ih_b"], params["b_hh_b"])[:, ::-1]
    last = jnp.concatenate([hf[:, -1], hb[:, -1]], axis=-1)
    z1 = jnp.maximum(last @ params["fc1_w"].T + params["fc1_b"], 0.0)
    z2 = jnp.maximum(z1 @ params["fc2_w"].T + params["fc2_b"], 0.0)
    return z2 @ params["fc3_w"].T + params["fc3_b"]


if __name__ == "__main__":
    key = jax.random.PRNGKey(0)
    pkey, xkey = jax.random.split(key)
    params = init_params(pkey)
    prep = prepare_params(params)          # one-time weight preprocessing

    # H = 77 -> conv length 72 -> pool 24 -> pool 8 -> LSTM sequence length 8
    B, H = 2, 77
    dna = jax.random.uniform(xkey, (B, 1, H, 4), jnp.float32)

    fwd = jax.jit(cnn_lstm_v3_forward)
    out = jax.block_until_ready(fwd(prep, dna))

    ref = reference_forward(params, dna)
    assert out.shape == (B, 2), out.shape
    # tolerance accounts for the explicit bf16 MXU-operand casts (f32 accumulate)
    assert jnp.allclose(out, ref, rtol=2e-2, atol=2e-2), (out, ref)
    print("KERNEL_OK")
</pallas_src>

<mosaic_0001>
module attributes {stable_mosaic.version = 11 : i64} {
  func.func @kernel(%arg0: memref<576x24xbf16, #tpu.memory_space<vmem>>, %arg1: memref<168x32xf32, #tpu.memory_space<vmem>>, %arg2: memref<144x256xf32, #tpu.memory_space<vmem>>, %arg3: memref<56x8xf32, #tpu.memory_space<vmem>>, %arg4: memref<2x2xf32, #tpu.memory_space<vmem>>) attributes {dimension_semantics = [], scalar_prefetch = 0 : i64, scratch_operands = 0 : i64, tpu.core_type = #tpu.core_type<tc>} {
    %c0 = arith.constant 0 : index
    %c0_0 = arith.constant 0 : index
    %0 = vector.load %arg1[%c0, %c0_0] : memref<168x32xf32, #tpu.memory_space<vmem>>, vector<24x32xf32>
    %1 = arith.truncf %0 : vector<24x32xf32> to vector<24x32xbf16>
    %c24 = arith.constant 24 : index
    %c0_1 = arith.constant 0 : index
    %2 = vector.load %arg1[%c24, %c0_1] : memref<168x32xf32, #tpu.memory_space<vmem>>, vector<1x32xf32>
    %c0_2 = arith.constant 0 : index
    %c0_3 = arith.constant 0 : index
    %3 = vector.load %arg0[%c0_2, %c0_3] : memref<576x24xbf16, #tpu.memory_space<vmem>>, vector<576x24xbf16>
    %cst = arith.constant dense<0.000000e+00> : vector<576x32xf32>
    %4 = tpu.matmul %3, %1, %cst {dimension_numbers = #tpu.dot_dimension_numbers<[1], [0], [0], [1], [0, 0, 1, 1], [], []>} : vector<576x24xbf16>, vector<24x32xbf16>, vector<576x32xf32> -> vector<576x32xf32>
    %5 = vector.broadcast %2 : vector<1x32xf32> to vector<576x32xf32>
    %6 = arith.addf %4, %5 : vector<576x32xf32>
    %cst_4 = arith.constant 0.000000e+00 : f32
    %7 = vector.broadcast %cst_4 : f32 to vector<576x32xf32>
    %8 = arith.maximumf %6, %7 : vector<576x32xf32>
    %9 = vector.shape_cast %8 : vector<576x32xf32> to vector<8x9x8x32xf32>
    %cst_5 = arith.constant dense<0xFF800000> : vector<8x8x32xf32>
    %10 = vector.multi_reduction <maximumf>, %9, %cst_5 [1] : vector<8x9x8x32xf32> to vector<8x8x32xf32>
    %11 = vector.shape_cast %10 : vector<8x8x32xf32> to vector<64x32xf32>
    %c0_6 = arith.constant 0 : index
    %c0_7 = arith.constant 0 : index
    %12 = vector.load %arg2[%c0_6, %c0_7] : memref<144x256xf32, #tpu.memory_space<vmem>>, vector<32x256xf32>
    %13 = arith.truncf %12 : vector<32x256xf32> to vector<32x256xbf16>
    %c32 = arith.constant 32 : index
    %c0_8 = arith.constant 0 : index
    %14 = vector.load %arg2[%c32, %c0_8] : memref<144x256xf32, #tpu.memory_space<vmem>>, vector<1x256xf32>
    %c40 = arith.constant 40 : index
    %c0_9 = arith.constant 0 : index
    %15 = vector.load %arg2[%c40, %c0_9] : memref<144x256xf32, #tpu.memory_space<vmem>>, vector<64x256xf32>
    %16 = arith.truncf %15 : vector<64x256xf32> to vector<64x256xbf16>
    %17 = arith.truncf %11 : vector<64x32xf32> to vector<64x32xbf16>
    %cst_10 = arith.constant dense<0.000000e+00> : vector<64x256xf32>
    %18 = tpu.matmul %17, %13, %cst_10 {dimension_numbers = #tpu.dot_dimension_numbers<[1], [0], [0], [1], [0, 0, 1, 1], [], []>} : vector<64x32xbf16>, vector<32x256xbf16>, vector<64x256xf32> -> vector<64x256xf32>
    %19 = vector.broadcast %14 : vector<1x256xf32> to vector<64x256xf32>
    %20 = arith.addf %18, %19 : vector<64x256xf32>
    %cst_11 = arith.constant 0.000000e+00 : f32
    %21 = vector.broadcast %cst_11 : f32 to vector<8x64xf32>
    %cst_12 = arith.constant 0.000000e+00 : f32
    %22 = vector.broadcast %cst_12 : f32 to vector<8x64xf32>
    %23 = vector.extract_strided_slice %20 {offsets = [0, 0], sizes = [8, 256], strides = [1, 1]} : vector<64x256xf32> to vector<8x256xf32>
    %24 = arith.truncf %21 : vector<8x64xf32> to vector<8x64xbf16>
    %cst_13 = arith.constant dense<0.000000e+00> : vector<8x256xf32>
    %25 = tpu.matmul %24, %16, %cst_13 {dimension_numbers = #tpu.dot_dimension_numbers<[1], [0], [0], [1], [0, 0, 1, 1], [], []>} : vector<8x64xbf16>, vector<64x256xbf16>, vector<8x256xf32> -> vector<8x256xf32>
    %26 = arith.addf %23, %25 : vector<8x256xf32>
    %cst_14 = arith.constant 5.000000e-01 : f32
    %27 = vector.broadcast %cst_14 : f32 to vector<8x256xf32>
    %28 = arith.mulf %27, %26 : vector<8x256xf32>
    %29 = math.tanh %28 : vector<8x256xf32>
    %cst_15 = arith.constant 5.000000e-01 : f32
    %30 = vector.broadcast %cst_15 : f32 to vector<8x256xf32>
    %31 = arith.mulf %30, %29 : vector<8x256xf32>
    %cst_16 = arith.constant 5.000000e-01 : f32
    %32 = vector.broadcast %cst_16 : f32 to vector<8x256xf32>
    %33 = arith.addf %31, %32 : vector<8x256xf32>
    %34 = vector.extract_strided_slice %33 {offsets = [0, 0], sizes = [8, 64], strides = [1, 1]} : vector<8x256xf32> to vector<8x64xf32>
    %35 = vector.extract_strided_slice %33 {offsets = [0, 64], sizes = [8, 64], strides = [1, 1]} : vector<8x256xf32> to vector<8x64xf32>
    %36 = vector.extract_strided_slice %33 {offsets = [0, 192], sizes = [8, 64], strides = [1, 1]} : vector<8x256xf32> to vector<8x64xf32>
    %37 = vector.extract_strided_slice %26 {offsets = [0, 128], sizes = [8, 64], strides = [1, 1]} : vector<8x256xf32> to vector<8x64xf32>
    %38 = math.tanh %37 : vector<8x64xf32>
    %39 = arith.mulf %35, %22 : vector<8x64xf32>
    %40 = arith.mulf %34, %38 : vector<8x64xf32>
    %41 = arith.addf %39, %40 : vector<8x64xf32>
    %42 = math.tanh %41 : vector<8x64xf32>
    %43 = arith.mulf %36, %42 : vector<8x64xf32>
    %44 = vector.extract_strided_slice %20 {offsets = [8, 0], sizes = [8, 256], strides = [1, 1]} : vector<64x256xf32> to vector<8x256xf32>
    %45 = arith.truncf %43 : vector<8x64xf32> to vector<8x64xbf16>
    %cst_17 = arith.constant dense<0.000000e+00> : vector<8x256xf32>
    %46 = tpu.matmul %45, %16, %cst_17 {dimension_numbers = #tpu.dot_dimension_numbers<[1], [0], [0], [1], [0, 0, 1, 1], [], []>} : vector<8x64xbf16>, vector<64x256xbf16>, vector<8x256xf32> -> vector<8x256xf32>
    %47 = arith.addf %44, %46 : vector<8x256xf32>
    %cst_18 = arith.constant 5.000000e-01 : f32
    %48 = vector.broadcast %cst_18 : f32 to vector<8x256xf32>
    %49 = arith.mulf %48, %47 : vector<8x256xf32>
    %50 = math.tanh %49 : vector<8x256xf32>
    %cst_19 = arith.constant 5.000000e-01 : f32
    %51 = vector.broadcast %cst_19 : f32 to vector<8x256xf32>
    %52 = arith.mulf %51, %50 : vector<8x256xf32>
    %cst_20 = arith.constant 5.000000e-01 : f32
    %53 = vector.broadcast %cst_20 : f32 to vector<8x256xf32>
    %54 = arith.addf %52, %53 : vector<8x256xf32>
    %55 = vector.extract_strided_slice %54 {offsets = [0, 0], sizes = [8, 64], strides = [1, 1]} : vector<8x256xf32> to vector<8x64xf32>
    %56 = vector.extract_strided_slice %54 {offsets = [0, 64], sizes = [8, 64], strides = [1, 1]} : vector<8x256xf32> to vector<8x64xf32>
    %57 = vector.extract_strided_slice %54 {offsets = [0, 192], sizes = [8, 64], strides = [1, 1]} : vector<8x256xf32> to vector<8x64xf32>
    %58 = vector.extract_strided_slice %47 {offsets = [0, 128], sizes = [8, 64], strides = [1, 1]} : vector<8x256xf32> to vector<8x64xf32>
    %59 = math.tanh %58 : vector<8x64xf32>
    %60 = arith.mulf %56, %41 : vector<8x64xf32>
    %61 = arith.mulf %55, %59 : vector<8x64xf32>
    %62 = arith.addf %60, %61 : vector<8x64xf32>
    %63 = math.tanh %62 : vector<8x64xf32>
    %64 = arith.mulf %57, %63 : vector<8x64xf32>
    %65 = vector.extract_strided_slice %20 {offsets = [16, 0], sizes = [8, 256], strides = [1, 1]} : vector<64x256xf32> to vector<8x256xf32>
    %66 = arith.truncf %64 : vector<8x64xf32> to vector<8x64xbf16>
    %cst_21 = arith.constant dense<0.000000e+00> : vector<8x256xf32>
    %67 = tpu.matmul %66, %16, %cst_21 {dimension_numbers = #tpu.dot_dimension_numbers<[1], [0], [0], [1], [0, 0, 1, 1], [], []>} : vector<8x64xbf16>, vector<64x256xbf16>, vector<8x256xf32> -> vector<8x256xf32>
    %68 = arith.addf %65, %67 : vector<8x256xf32>
    %cst_22 = arith.constant 5.000000e-01 : f32
    %69 = vector.broadcast %cst_22 : f32 to vector<8x256xf32>
    %70 = arith.mulf %69, %68 : vector<8x256xf32>
    %71 = math.tanh %70 : vector<8x256xf32>
    %cst_23 = arith.constant 5.000000e-01 : f32
    %72 = vector.broadcast %cst_23 : f32 to vector<8x256xf32>
    %73 = arith.mulf %72, %71 : vector<8x256xf32>
    %cst_24 = arith.constant 5.000000e-01 : f32
    %74 = vector.broadcast %cst_24 : f32 to vector<8x256xf32>
    %75 = arith.addf %73, %74 : vector<8x256xf32>
    %76 = vector.extract_strided_slice %75 {offsets = [0, 0], sizes = [8, 64], strides = [1, 1]} : vector<8x256xf32> to vector<8x64xf32>
    %77 = vector.extract_strided_slice %75 {offsets = [0, 64], sizes = [8, 64], strides = [1, 1]} : vector<8x256xf32> to vector<8x64xf32>
    %78 = vector.extract_strided_slice %75 {offsets = [0, 192], sizes = [8, 64], strides = [1, 1]} : vector<8x256xf32> to vector<8x64xf32>
    %79 = vector.extract_strided_slice %68 {offsets = [0, 128], sizes = [8, 64], strides = [1, 1]} : vector<8x256xf32> to vector<8x64xf32>
    %80 = math.tanh %79 : vector<8x64xf32>
    %81 = arith.mulf %77, %62 : vector<8x64xf32>
    %82 = arith.mulf %76, %80 : vector<8x64xf32>
    %83 = arith.addf %81, %82 : vector<8x64xf32>
    %84 = math.tanh %83 : vector<8x64xf32>
    %85 = arith.mulf %78, %84 : vector<8x64xf32>
    %86 = vector.extract_strided_slice %20 {offsets = [24, 0], sizes = [8, 256], strides = [1, 1]} : vector<64x256xf32> to vector<8x256xf32>
    %87 = arith.truncf %85 : vector<8x64xf32> to vector<8x64xbf16>
    %cst_25 = arith.constant dense<0.000000e+00> : vector<8x256xf32>
    %88 = tpu.matmul %87, %16, %cst_25 {dimension_numbers = #tpu.dot_dimension_numbers<[1], [0], [0], [1], [0, 0, 1, 1], [], []>} : vector<8x64xbf16>, vector<64x256xbf16>, vector<8x256xf32> -> vector<8x256xf32>
    %89 = arith.addf %86, %88 : vector<8x256xf32>
    %cst_26 = arith.constant 5.000000e-01 : f32
    %90 = vector.broadcast %cst_26 : f32 to vector<8x256xf32>
    %91 = arith.mulf %90, %89 : vector<8x256xf32>
    %92 = math.tanh %91 : vector<8x256xf32>
    %cst_27 = arith.constant 5.000000e-01 : f32
    %93 = vector.broadcast %cst_27 : f32 to vector<8x256xf32>
    %94 = arith.mulf %93, %92 : vector<8x256xf32>
    %cst_28 = arith.constant 5.000000e-01 : f32
    %95 = vector.broadcast %cst_28 : f32 to vector<8x256xf32>
    %96 = arith.addf %94, %95 : vector<8x256xf32>
    %97 = vector.extract_strided_slice %96 {offsets = [0, 0], sizes = [8, 64], strides = [1, 1]} : vector<8x256xf32> to vector<8x64xf32>
    %98 = vector.extract_strided_slice %96 {offsets = [0, 64], sizes = [8, 64], strides = [1, 1]} : vector<8x256xf32> to vector<8x64xf32>
    %99 = vector.extract_strided_slice %96 {offsets = [0, 192], sizes = [8, 64], strides = [1, 1]} : vector<8x256xf32> to vector<8x64xf32>
    %100 = vector.extract_strided_slice %89 {offsets = [0, 128], sizes = [8, 64], strides = [1, 1]} : vector<8x256xf32> to vector<8x64xf32>
    %101 = math.tanh %100 : vector<8x64xf32>
    %102 = arith.mulf %98, %83 : vector<8x64xf32>
    %103 = arith.mulf %97, %101 : vector<8x64xf32>
    %104 = arith.addf %102, %103 : vector<8x64xf32>
    %105 = math.tanh %104 : vector<8x64xf32>
    %106 = arith.mulf %99, %105 : vector<8x64xf32>
    %107 = vector.extract_strided_slice %20 {offsets = [32, 0], sizes = [8, 256], strides = [1, 1]} : vector<64x256xf32> to vector<8x256xf32>
    %108 = arith.truncf %106 : vector<8x64xf32> to vector<8x64xbf16>
    %cst_29 = arith.constant dense<0.000000e+00> : vector<8x256xf32>
    %109 = tpu.matmul %108, %16, %cst_29 {dimension_numbers = #tpu.dot_dimension_numbers<[1], [0], [0], [1], [0, 0, 1, 1], [], []>} : vector<8x64xbf16>, vector<64x256xbf16>, vector<8x256xf32> -> vector<8x256xf32>
    %110 = arith.addf %107, %109 : vector<8x256xf32>
    %cst_30 = arith.constant 5.000000e-01 : f32
    %111 = vector.broadcast %cst_30 : f32 to vector<8x256xf32>
    %112 = arith.mulf %111, %110 : vector<8x256xf32>
    %113 = math.tanh %112 : vector<8x256xf32>
    %cst_31 = arith.constant 5.000000e-01 : f32
    %114 = vector.broadcast %cst_31 : f32 to vector<8x256xf32>
    %115 = arith.mulf %114, %113 : vector<8x256xf32>
    %cst_32 = arith.constant 5.000000e-01 : f32
    %116 = vector.broadcast %cst_32 : f32 to vector<8x256xf32>
    %117 = arith.addf %115, %116 : vector<8x256xf32>
    %118 = vector.extract_strided_slice %117 {offsets = [0, 0], sizes = [8, 64], strides = [1, 1]} : vector<8x256xf32> to vector<8x64xf32>
    %119 = vector.extract_strided_slice %117 {offsets = [0, 64], sizes = [8, 64], strides = [1, 1]} : vector<8x256xf32> to vector<8x64xf32>
    %120 = vector.extract_strided_slice %117 {offsets = [0, 192], sizes = [8, 64], strides = [1, 1]} : vector<8x256xf32> to vector<8x64xf32>
    %121 = vector.extract_strided_slice %110 {offsets = [0, 128], sizes = [8, 64], strides = [1, 1]} : vector<8x256xf32> to vector<8x64xf32>
    %122 = math.tanh %121 : vector<8x64xf32>
    %123 = arith.mulf %119, %104 : vector<8x64xf32>
    %124 = arith.mulf %118, %122 : vector<8x64xf32>
    %125 = arith.addf %123, %124 : vector<8x64xf32>
    %126 = math.tanh %125 : vector<8x64xf32>
    %127 = arith.mulf %120, %126 : vector<8x64xf32>
    %128 = vector.extract_strided_slice %20 {offsets = [40, 0], sizes = [8, 256], strides = [1, 1]} : vector<64x256xf32> to vector<8x256xf32>
    %129 = arith.truncf %127 : vector<8x64xf32> to vector<8x64xbf16>
    %cst_33 = arith.constant dense<0.000000e+00> : vector<8x256xf32>
    %130 = tpu.matmul %129, %16, %cst_33 {dimension_numbers = #tpu.dot_dimension_numbers<[1], [0], [0], [1], [0, 0, 1, 1], [], []>} : vector<8x64xbf16>, vector<64x256xbf16>, vector<8x256xf32> -> vector<8x256xf32>
    %131 = arith.addf %128, %130 : vector<8x256xf32>
    %cst_34 = arith.constant 5.000000e-01 : f32
    %132 = vector.broadcast %cst_34 : f32 to vector<8x256xf32>
    %133 = arith.mulf %132, %131 : vector<8x256xf32>
    %134 = math.tanh %133 : vector<8x256xf32>
    %cst_35 = arith.constant 5.000000e-01 : f32
    %135 = vector.broadcast %cst_35 : f32 to vector<8x256xf32>
    %136 = arith.mulf %135, %134 : vector<8x256xf32>
    %cst_36 = arith.constant 5.000000e-01 : f32
    %137 = vector.broadcast %cst_36 : f32 to vector<8x256xf32>
    %138 = arith.addf %136, %137 : vector<8x256xf32>
    %139 = vector.extract_strided_slice %138 {offsets = [0, 0], sizes = [8, 64], strides = [1, 1]} : vector<8x256xf32> to vector<8x64xf32>
    %140 = vector.extract_strided_slice %138 {offsets = [0, 64], sizes = [8, 64], strides = [1, 1]} : vector<8x256xf32> to vector<8x64xf32>
    %141 = vector.extract_strided_slice %138 {offsets = [0, 192], sizes = [8, 64], strides = [1, 1]} : vector<8x256xf32> to vector<8x64xf32>
    %142 = vector.extract_strided_slice %131 {offsets = [0, 128], sizes = [8, 64], strides = [1, 1]} : vector<8x256xf32> to vector<8x64xf32>
    %143 = math.tanh %142 : vector<8x64xf32>
    %144 = arith.mulf %140, %125 : vector<8x64xf32>
    %145 = arith.mulf %139, %143 : vector<8x64xf32>
    %146 = arith.addf %144, %145 : vector<8x64xf32>
    %147 = math.tanh %146 : vector<8x64xf32>
    %148 = arith.mulf %141, %147 : vector<8x64xf32>
    %149 = vector.extract_strided_slice %20 {offsets = [48, 0], sizes = [8, 256], strides = [1, 1]} : vector<64x256xf32> to vector<8x256xf32>
    %150 = arith.truncf %148 : vector<8x64xf32> to vector<8x64xbf16>
    %cst_37 = arith.constant dense<0.000000e+00> : vector<8x256xf32>
    %151 = tpu.matmul %150, %16, %cst_37 {dimension_numbers = #tpu.dot_dimension_numbers<[1], [0], [0], [1], [0, 0, 1, 1], [], []>} : vector<8x64xbf16>, vector<64x256xbf16>, vector<8x256xf32> -> vector<8x256xf32>
    %152 = arith.addf %149, %151 : vector<8x256xf32>
    %cst_38 = arith.constant 5.000000e-01 : f32
    %153 = vector.broadcast %cst_38 : f32 to vector<8x256xf32>
    %154 = arith.mulf %153, %152 : vector<8x256xf32>
    %155 = math.tanh %154 : vector<8x256xf32>
    %cst_39 = arith.constant 5.000000e-01 : f32
    %156 = vector.broadcast %cst_39 : f32 to vector<8x256xf32>
    %157 = arith.mulf %156, %155 : vector<8x256xf32>
    %cst_40 = arith.constant 5.000000e-01 : f32
    %158 = vector.broadcast %cst_40 : f32 to vector<8x256xf32>
    %159 = arith.addf %157, %158 : vector<8x256xf32>
    %160 = vector.extract_strided_slice %159 {offsets = [0, 0], sizes = [8, 64], strides = [1, 1]} : vector<8x256xf32> to vector<8x64xf32>
    %161 = vector.extract_strided_slice %159 {offsets = [0, 64], sizes = [8, 64], strides = [1, 1]} : vector<8x256xf32> to vector<8x64xf32>
    %162 = vector.extract_strided_slice %159 {offsets = [0, 192], sizes = [8, 64], strides = [1, 1]} : vector<8x256xf32> to vector<8x64xf32>
    %163 = vector.extract_strided_slice %152 {offsets = [0, 128], sizes = [8, 64], strides = [1, 1]} : vector<8x256xf32> to vector<8x64xf32>
    %164 = math.tanh %163 : vector<8x64xf32>
    %165 = arith.mulf %161, %146 : vector<8x64xf32>
    %166 = arith.mulf %160, %164 : vector<8x64xf32>
    %167 = arith.addf %165, %166 : vector<8x64xf32>
    %168 = math.tanh %167 : vector<8x64xf32>
    %169 = arith.mulf %162, %168 : vector<8x64xf32>
    %170 = vector.extract_strided_slice %20 {offsets = [56, 0], sizes = [8, 256], strides = [1, 1]} : vector<64x256xf32> to vector<8x256xf32>
    %171 = arith.truncf %169 : vector<8x64xf32> to vector<8x64xbf16>
    %cst_41 = arith.constant dense<0.000000e+00> : vector<8x256xf32>
    %172 = tpu.matmul %171, %16, %cst_41 {dimension_numbers = #tpu.dot_dimension_numbers<[1], [0], [0], [1], [0, 0, 1, 1], [], []>} : vector<8x64xbf16>, vector<64x256xbf16>, vector<8x256xf32> -> vector<8x256xf32>
    %173 = arith.addf %170, %172 : vector<8x256xf32>
    %cst_42 = arith.constant 5.000000e-01 : f32
    %174 = vector.broadcast %cst_42 : f32 to vector<8x256xf32>
    %175 = arith.mulf %174, %173 : vector<8x256xf32>
    %176 = math.tanh %175 : vector<8x256xf32>
    %cst_43 = arith.constant 5.000000e-01 : f32
    %177 = vector.broadcast %cst_43 : f32 to vector<8x256xf32>
    %178 = arith.mulf %177, %176 : vector<8x256xf32>
    %cst_44 = arith.constant 5.000000e-01 : f32
    %179 = vector.broadcast %cst_44 : f32 to vector<8x256xf32>
    %180 = arith.addf %178, %179 : vector<8x256xf32>
    %181 = vector.extract_strided_slice %180 {offsets = [0, 0], sizes = [8, 64], strides = [1, 1]} : vector<8x256xf32> to vector<8x64xf32>
    %182 = vector.extract_strided_slice %180 {offsets = [0, 64], sizes = [8, 64], strides = [1, 1]} : vector<8x256xf32> to vector<8x64xf32>
    %183 = vector.extract_strided_slice %180 {offsets = [0, 192], sizes = [8, 64], strides = [1, 1]} : vector<8x256xf32> to vector<8x64xf32>
    %184 = vector.extract_strided_slice %173 {offsets = [0, 128], sizes = [8, 64], strides = [1, 1]} : vector<8x256xf32> to vector<8x64xf32>
    %185 = math.tanh %184 : vector<8x64xf32>
    %186 = arith.mulf %182, %167 : vector<8x64xf32>
    %187 = arith.mulf %181, %185 : vector<8x64xf32>
    %188 = arith.addf %186, %187 : vector<8x64xf32>
    %189 = math.tanh %188 : vector<8x64xf32>
    %190 = arith.mulf %183, %189 : vector<8x64xf32>
    %c104 = arith.constant 104 : index
    %c0_45 = arith.constant 0 : index
    %191 = vector.load %arg2[%c104, %c0_45] : memref<144x256xf32, #tpu.memory_space<vmem>>, vector<32x256xf32>
    %192 = arith.truncf %191 : vector<32x256xf32> to vector<32x256xbf16>
    %c136 = arith.constant 136 : index
    %c0_46 = arith.constant 0 : index
    %193 = vector.load %arg2[%c136, %c0_46] : memref<144x256xf32, #tpu.memory_space<vmem>>, vector<1x256xf32>
    %194 = vector.extract_strided_slice %11 {offsets = [56, 0], sizes = [8, 32], strides = [1, 1]} : vector<64x32xf32> to vector<8x32xf32>
    %195 = arith.truncf %194 : vector<8x32xf32> to vector<8x32xbf16>
    %cst_47 = arith.constant dense<0.000000e+00> : vector<8x256xf32>
    %196 = tpu.matmul %195, %192, %cst_47 {dimension_numbers = #tpu.dot_dimension_numbers<[1], [0], [0], [1], [0, 0, 1, 1], [], []>} : vector<8x32xbf16>, vector<32x256xbf16>, vector<8x256xf32> -> vector<8x256xf32>
    %197 = vector.broadcast %193 : vector<1x256xf32> to vector<8x256xf32>
    %198 = arith.addf %196, %197 : vector<8x256xf32>
    %cst_48 = arith.constant 5.000000e-01 : f32
    %199 = vector.broadcast %cst_48 : f32 to vector<8x256xf32>
    %200 = arith.mulf %199, %198 : vector<8x256xf32>
    %201 = math.tanh %200 : vector<8x256xf32>
    %cst_49 = arith.constant 5.000000e-01 : f32
    %202 = vector.broadcast %cst_49 : f32 to vector<8x256xf32>
    %203 = arith.mulf %202, %201 : vector<8x256xf32>
    %cst_50 = arith.constant 5.000000e-01 : f32
    %204 = vector.broadcast %cst_50 : f32 to vector<8x256xf32>
    %205 = arith.addf %203, %204 : vector<8x256xf32>
    %206 = vector.extract_strided_slice %205 {offsets = [0, 0], sizes = [8, 64], strides = [1, 1]} : vector<8x256xf32> to vector<8x64xf32>
    %207 = vector.extract_strided_slice %205 {offsets = [0, 192], sizes = [8, 64], strides = [1, 1]} : vector<8x256xf32> to vector<8x64xf32>
    %208 = vector.extract_strided_slice %198 {offsets = [0, 128], sizes = [8, 64], strides = [1, 1]} : vector<8x256xf32> to vector<8x64xf32>
    %209 = math.tanh %208 : vector<8x64xf32>
    %210 = arith.mulf %206, %209 : vector<8x64xf32>
    %211 = math.tanh %210 : vector<8x64xf32>
    %212 = arith.mulf %207, %211 : vector<8x64xf32>
    %c32_51 = arith.constant 32 : index
    %c0_52 = arith.constant 0 : index
    %213 = vector.load %arg1[%c32_51, %c0_52] : memref<168x32xf32, #tpu.memory_space<vmem>>, vector<64x32xf32>
    %214 = arith.truncf %213 : vector<64x32xf32> to vector<64x32xbf16>
    %c96 = arith.constant 96 : index
    %c0_53 = arith.constant 0 : index
    %215 = vector.load %arg1[%c96, %c0_53] : memref<168x32xf32, #tpu.memory_space<vmem>>, vector<64x32xf32>
    %216 = arith.truncf %215 : vector<64x32xf32> to vector<64x32xbf16>
    %c160 = arith.constant 160 : index
    %c0_54 = arith.constant 0 : index
    %217 = vector.load %arg1[%c160, %c0_54] : memref<168x32xf32, #tpu.memory_space<vmem>>, vector<1x32xf32>
    %218 = arith.truncf %190 : vector<8x64xf32> to vector<8x64xbf16>
    %cst_55 = arith.constant dense<0.000000e+00> : vector<8x32xf32>
    %219 = tpu.matmul %218, %214, %cst_55 {dimension_numbers = #tpu.dot_dimension_numbers<[1], [0], [0], [1], [0, 0, 1, 1], [], []>} : vector<8x64xbf16>, vector<64x32xbf16>, vector<8x32xf32> -> vector<8x32xf32>
    %220 = arith.truncf %212 : vector<8x64xf32> to vector<8x64xbf16>
    %cst_56 = arith.constant dense<0.000000e+00> : vector<8x32xf32>
    %221 = tpu.matmul %220, %216, %cst_56 {dimension_numbers = #tpu.dot_dimension_numbers<[1], [0], [0], [1], [0, 0, 1, 1], [], []>} : vector<8x64xbf16>, vector<64x32xbf16>, vector<8x32xf32> -> vector<8x32xf32>
    %222 = arith.addf %219, %221 : vector<8x32xf32>
    %223 = vector.broadcast %217 : vector<1x32xf32> to vector<8x32xf32>
    %224 = arith.addf %222, %223 : vector<8x32xf32>
    %cst_57 = arith.constant 0.000000e+00 : f32
    %225 = vector.broadcast %cst_57 : f32 to vector<8x32xf32>
    %226 = arith.maximumf %224, %225 : vector<8x32xf32>
    %c0_58 = arith.constant 0 : index
    %c0_59 = arith.constant 0 : index
    %227 = vector.load %arg3[%c0_58, %c0_59] : memref<56x8xf32, #tpu.memory_space<vmem>>, vector<32x8xf32>
    %228 = arith.truncf %227 : vector<32x8xf32> to vector<32x8xbf16>
    %c32_60 = arith.constant 32 : index
    %c0_61 = arith.constant 0 : index
    %229 = vector.load %arg3[%c32_60, %c0_61] : memref<56x8xf32, #tpu.memory_space<vmem>>, vector<1x8xf32>
    %230 = arith.truncf %226 : vector<8x32xf32> to vector<8x32xbf16>
    %cst_62 = arith.constant dense<0.000000e+00> : vector<8x8xf32>
    %231 = tpu.matmul %230, %228, %cst_62 {dimension_numbers = #tpu.dot_dimension_numbers<[1], [0], [0], [1], [0, 0, 1, 1], [], []>} : vector<8x32xbf16>, vector<32x8xbf16>, vector<8x8xf32> -> vector<8x8xf32>
    %232 = vector.broadcast %229 : vector<1x8xf32> to vector<8x8xf32>
    %233 = arith.addf %231, %232 : vector<8x8xf32>
    %cst_63 = arith.constant 0.000000e+00 : f32
    %234 = vector.broadcast %cst_63 : f32 to vector<8x8xf32>
    %235 = arith.maximumf %233, %234 : vector<8x8xf32>
    %c40_64 = arith.constant 40 : index
    %c0_65 = arith.constant 0 : index
    %236 = vector.load %arg3[%c40_64, %c0_65] : memref<56x8xf32, #tpu.memory_space<vmem>>, vector<8x2xf32>
    %237 = arith.truncf %236 : vector<8x2xf32> to vector<8x2xbf16>
    %c48 = arith.constant 48 : index
    %c0_66 = arith.constant 0 : index
    %238 = vector.load %arg3[%c48, %c0_66] : memref<56x8xf32, #tpu.memory_space<vmem>>, vector<1x2xf32>
    %239 = arith.truncf %235 : vector<8x8xf32> to vector<8x8xbf16>
    %cst_67 = arith.constant dense<0.000000e+00> : vector<8x2xf32>
    %240 = tpu.matmul %239, %237, %cst_67 {dimension_numbers = #tpu.dot_dimension_numbers<[1], [0], [0], [1], [0, 0, 1, 1], [], []>} : vector<8x8xbf16>, vector<8x2xbf16>, vector<8x2xf32> -> vector<8x2xf32>
    %241 = vector.broadcast %238 : vector<1x2xf32> to vector<8x2xf32>
    %242 = arith.addf %240, %241 : vector<8x2xf32>
    %243 = vector.extract_strided_slice %242 {offsets = [0, 0], sizes = [2, 2], strides = [1, 1]} : vector<8x2xf32> to vector<2x2xf32>
    %c0_68 = arith.constant 0 : index
    %c0_69 = arith.constant 0 : index
    %244 = vector.load %arg4[%c0_68, %c0_69] : memref<2x2xf32, #tpu.memory_space<vmem>>, vector<2x2xf32>
    tpu.vector_store %arg4[%c0_68, %c0_69], %243 {strides = array<i32>} : memref<2x2xf32, #tpu.memory_space<vmem>>, vector<2x2xf32>,
    return
  }
}

</mosaic_0001>

<llo_original>
// kernel: cnn_lstm_v3_forward.1
$region0: #{cnn_lstm_v3_forward.1}
  #allocation0 [shape = 'u32[]', space=smem, size = 0x4, offset = 0x4, fixed_abs, tag = 'smem constant byte address 0x4 - core index']
  #allocation1 [shape = 'u32[144,128]{1,0:T(1,128)}', space=vmem, size = 0x12000, scoped, tag = 'internal scratch']
  %s0 = inlined_call_operand.vmem [shape: bf16[576,24], index: 0, kind: input, shape index: {}]
  %s1 = inlined_call_operand.vmem [shape: f32[168,32], index: 1, kind: input, shape index: {}]
  %s2 = inlined_call_operand.vmem [shape: f32[144,256], index: 2, kind: input, shape index: {}]
  %s3 = inlined_call_operand.vmem [shape: f32[56,8], index: 3, kind: input, shape index: {}]
  %s4 = inlined_call_operand.hbm [shape: f32[2,2], index: 4, kind: output, shape index: {}]
  %s5 = sld [smem:[#allocation0]]
  $region26: #{cnn_lstm_v3_forward.1} parent=0
    _
  %s7 = ssub.s32 1, %s5
  %s8 = scalar_select 0, %s7, %s5
  $region1: #{cnn_lstm_v3_forward.1} parent=0
    #allocation2 [shape = 'u8[1024]{0}', space=vmem, size = 0x400, scoped, tag = 'output window, operand 0, single buffered']
    #allocation3 [shape = 's32[1]{0}', space=sflag, size = 0x4, scoped, tag = 'scoped memory for cnn_lstm_v3_forward.1']
    %9 = vsyncpa [#allocation3], 0
    // Predicated region
    $region2: #{cnn_lstm_v3_forward.1} parent=1 // pred_check
      _
    $region3: #{cnn_lstm_v3_forward.1} parent=1 // pred_check_branch
      %11 = sbr.rel (0) target = $region5
    $region4: #{cnn_lstm_v3_forward.1} parent=1 // pred_region
      _
    $region5: #{cnn_lstm_v3_forward.1} parent=1 // pred_fallthru
      _
    // Predicated region
    $region6: #{cnn_lstm_v3_forward.1} parent=1 // pred_check
      _
    $region7: #{cnn_lstm_v3_forward.1} parent=1 // pred_check_branch
      %13 = sbr.rel (0) target = $region9
    $region8: #{cnn_lstm_v3_forward.1} parent=1 // pred_region
      _
    $region9: #{cnn_lstm_v3_forward.1} parent=1 // pred_fallthru
      _
    // Predicated region
    $region10: #{cnn_lstm_v3_forward.1} parent=1 // pred_check
      _
    $region11: #{cnn_lstm_v3_forward.1} parent=1 // pred_check_branch
      %15 = sbr.rel (0) target = $region13
    $region12: #{cnn_lstm_v3_forward.1} parent=1 // pred_region
      _
    $region13: #{cnn_lstm_v3_forward.1} parent=1 // pred_fallthru
      _
    // Predicated region
    $region14: #{cnn_lstm_v3_forward.1} parent=1 // pred_check
      _
    $region15: #{cnn_lstm_v3_forward.1} parent=1 // pred_check_branch
      %17 = sbr.rel (0) target = $region17
    $region16: #{cnn_lstm_v3_forward.1} parent=1 // pred_region
      _
    $region17: #{cnn_lstm_v3_forward.1} parent=1 // pred_fallthru
      _
    %v19 = vld [vmem:[%s1] sm:$0xff]
    %v20 = vld [vmem:[%s1 + $0x8] sm:$0xff]
    %v21 = vld [vmem:[%s1 + $0x10] sm:$0xff]
    %v22 = vpack.c.bf16 %v20, %v19
    %v23 = vpack.c.bf16 %v21, %v21
    %v24 = vld [vmem:[%s1 + $0x18] sm:$0x1]
    %v25 = vld [vmem:[%s0] sm:$0xf]
    %v26 = vld [vmem:[%s0 + $0x4] sm:$0xf]
    %v27 = vld [vmem:[%s0 + $0x8] sm:$0xf]
    %v28 = vld [vmem:[%s0 + $0xc] sm:$0xf]
    %v29 = vld [vmem:[%s0 + $0x10] sm:$0xf]
    %v30 = vld [vmem:[%s0 + $0x14] sm:$0xf]
    %v31 = vld [vmem:[%s0 + $0x18] sm:$0xf]
    %v32 = vld [vmem:[%s0 + $0x1c] sm:$0xf]
    %v33 = vld [vmem:[%s0 + $0x20] sm:$0xf]
    %v34 = vld [vmem:[%s0 + $0x24] sm:$0xf]
    %v35 = vld [vmem:[%s0 + $0x28] sm:$0xf]
    %v36 = vld [vmem:[%s0 + $0x2c] sm:$0xf]
    %v37 = vld [vmem:[%s0 + $0x30] sm:$0xf]
    %v38 = vld [vmem:[%s0 + $0x34] sm:$0xf]
    %v39 = vld [vmem:[%s0 + $0x38] sm:$0xf]
    %v40 = vld [vmem:[%s0 + $0x3c] sm:$0xf]
    %v41 = vld [vmem:[%s0 + $0x40] sm:$0xf]
    %v42 = vld [vmem:[%s0 + $0x44] sm:$0xf]
    %v43 = vld [vmem:[%s0 + $0x48] sm:$0xf]
    %v44 = vld [vmem:[%s0 + $0x4c] sm:$0xf]
    %v45 = vld [vmem:[%s0 + $0x50] sm:$0xf]
    %v46 = vld [vmem:[%s0 + $0x54] sm:$0xf]
    %v47 = vld [vmem:[%s0 + $0x58] sm:$0xf]
    %v48 = vld [vmem:[%s0 + $0x5c] sm:$0xf]
    %v49 = vld [vmem:[%s0 + $0x60] sm:$0xf]
    %v50 = vld [vmem:[%s0 + $0x64] sm:$0xf]
    %v51 = vld [vmem:[%s0 + $0x68] sm:$0xf]
    %v52 = vld [vmem:[%s0 + $0x6c] sm:$0xf]
    %v53 = vld [vmem:[%s0 + $0x70] sm:$0xf]
    %v54 = vld [vmem:[%s0 + $0x74] sm:$0xf]
    %v55 = vld [vmem:[%s0 + $0x78] sm:$0xf]
    %v56 = vld [vmem:[%s0 + $0x7c] sm:$0xf]
    %v57 = vld [vmem:[%s0 + $0x80] sm:$0xf]
    %v58 = vld [vmem:[%s0 + $0x84] sm:$0xf]
    %v59 = vld [vmem:[%s0 + $0x88] sm:$0xf]
    %v60 = vld [vmem:[%s0 + $0x8c] sm:$0xf]
    %v61 = vld [vmem:[%s0 + $0x90] sm:$0xf]
    %v62 = vld [vmem:[%s0 + $0x94] sm:$0xf]
    %v63 = vld [vmem:[%s0 + $0x98] sm:$0xf]
    %v64 = vld [vmem:[%s0 + $0x9c] sm:$0xf]
    %v65 = vld [vmem:[%s0 + $0xa0] sm:$0xf]
    %v66 = vld [vmem:[%s0 + $0xa4] sm:$0xf]
    %v67 = vld [vmem:[%s0 + $0xa8] sm:$0xf]
    %v68 = vld [vmem:[%s0 + $0xac] sm:$0xf]
    %v69 = vld [vmem:[%s0 + $0xb0] sm:$0xf]
    %v70 = vld [vmem:[%s0 + $0xb4] sm:$0xf]
    %v71 = vld [vmem:[%s0 + $0xb8] sm:$0xf]
    %v72 = vld [vmem:[%s0 + $0xbc] sm:$0xf]
    %v73 = vld [vmem:[%s0 + $0xc0] sm:$0xf]
    %v74 = vld [vmem:[%s0 + $0xc4] sm:$0xf]
    %v75 = vld [vmem:[%s0 + $0xc8] sm:$0xf]
    %v76 = vld [vmem:[%s0 + $0xcc] sm:$0xf]
    %v77 = vld [vmem:[%s0 + $0xd0] sm:$0xf]
    %v78 = vld [vmem:[%s0 + $0xd4] sm:$0xf]
    %v79 = vld [vmem:[%s0 + $0xd8] sm:$0xf]
    %v80 = vld [vmem:[%s0 + $0xdc] sm:$0xf]
    %v81 = vld [vmem:[%s0 + $0xe0] sm:$0xf]
    %v82 = vld [vmem:[%s0 + $0xe4] sm:$0xf]
    %v83 = vld [vmem:[%s0 + $0xe8] sm:$0xf]
    %v84 = vld [vmem:[%s0 + $0xec] sm:$0xf]
    %v85 = vld [vmem:[%s0 + $0xf0] sm:$0xf]
    %v86 = vld [vmem:[%s0 + $0xf4] sm:$0xf]
    %v87 = vld [vmem:[%s0 + $0xf8] sm:$0xf]
    %v88 = vld [vmem:[%s0 + $0xfc] sm:$0xf]
    %v89 = vld [vmem:[%s0 + $0x100] sm:$0xf]
    %v90 = vld [vmem:[%s0 + $0x104] sm:$0xf]
    %v91 = vld [vmem:[%s0 + $0x108] sm:$0xf]
    %v92 = vld [vmem:[%s0 + $0x10c] sm:$0xf]
    %v93 = vld [vmem:[%s0 + $0x110] sm:$0xf]
    %v94 = vld [vmem:[%s0 + $0x114] sm:$0xf]
    %v95 = vld [vmem:[%s0 + $0x118] sm:$0xf]
    %v96 = vld [vmem:[%s0 + $0x11c] sm:$0xf]
    %v97 = vlaneseq
    %v98 = vshrl.u32 %v97, 7
    %v99 = vsub.s32 0, %v98
    %v100 = vrot.slane %v24, %v99
    %v173 = vunpack.c.l.b16 %v25
    %v174 = vunpack.c.l.b16 %v26
    %v175 = vunpack.c.l.b16 %v27
    %v176 = vunpack.c.l.b16 %v28
    %v177 = vunpack.c.l.b16 %v29
    %v178 = vunpack.c.l.b16 %v30
    %v179 = vunpack.c.l.b16 %v31
    %v180 = vunpack.c.l.b16 %v32
    %v181 = vunpack.c.l.b16 %v33
    %v182 = vunpack.c.l.b16 %v34
    %v183 = vunpack.c.l.b16 %v35
    %v184 = vunpack.c.l.b16 %v36
    %v185 = vunpack.c.l.b16 %v37
    %v186 = vunpack.c.l.b16 %v38
    %v187 = vunpack.c.l.b16 %v39
    %v188 = vunpack.c.l.b16 %v40
    %v189 = vunpack.c.l.b16 %v41
    %v190 = vunpack.c.l.b16 %v42
    %v191 = vunpack.c.l.b16 %v43
    %v192 = vunpack.c.l.b16 %v44
    %v193 = vunpack.c.l.b16 %v45
    %v194 = vunpack.c.l.b16 %v46
    %v195 = vunpack.c.l.b16 %v47
    %v196 = vunpack.c.l.b16 %v48
    %v197 = vunpack.c.l.b16 %v49
    %v198 = vunpack.c.l.b16 %v50
    %v199 = vunpack.c.l.b16 %v51
    %v200 = vunpack.c.l.b16 %v52
    %v201 = vunpack.c.l.b16 %v53
    %v202 = vunpack.c.l.b16 %v54
    %v203 = vunpack.c.l.b16 %v55
    %v204 = vunpack.c.l.b16 %v56
    %v205 = vunpack.c.l.b16 %v57
    %v206 = vunpack.c.l.b16 %v58
    %v207 = vunpack.c.l.b16 %v59
    %v208 = vunpack.c.l.b16 %v60
    %v209 = vunpack.c.l.b16 %v61
    %v210 = vunpack.c.l.b16 %v62
    %v211 = vunpack.c.l.b16 %v63
    %v212 = vunpack.c.l.b16 %v64
    %v213 = vunpack.c.l.b16 %v65
    %v214 = vunpack.c.l.b16 %v66
    %v215 = vunpack.c.l.b16 %v67
    %v216 = vunpack.c.l.b16 %v68
    %v217 = vunpack.c.l.b16 %v69
    %v218 = vunpack.c.l.b16 %v70
    %v219 = vunpack.c.l.b16 %v71
    %v220 = vunpack.c.l.b16 %v72
    %v221 = vunpack.c.l.b16 %v73
    %v222 = vunpack.c.l.b16 %v74
    %v223 = vunpack.c.l.b16 %v75
    %v224 = vunpack.c.l.b16 %v76
    %v225 = vunpack.c.l.b16 %v77
    %v226 = vunpack.c.l.b16 %v78
    %v227 = vunpack.c.l.b16 %v79
    %v228 = vunpack.c.l.b16 %v80
    %v229 = vunpack.c.l.b16 %v81
    %v230 = vunpack.c.l.b16 %v82
    %v231 = vunpack.c.l.b16 %v83
    %v232 = vunpack.c.l.b16 %v84
    %v233 = vunpack.c.l.b16 %v85
    %v234 = vunpack.c.l.b16 %v86
    %v235 = vunpack.c.l.b16 %v87
    %v236 = vunpack.c.l.b16 %v88
    %v237 = vunpack.c.l.b16 %v89
    %v238 = vunpack.c.l.b16 %v90
    %v239 = vunpack.c.l.b16 %v91
    %v240 = vunpack.c.l.b16 %v92
    %v241 = vunpack.c.l.b16 %v93
    %v242 = vunpack.c.l.b16 %v94
    %v243 = vunpack.c.l.b16 %v95
    %v244 = vunpack.c.l.b16 %v96
    %v245 = vpack.c.b16 %v174, %v173
    %v246 = vpack.c.b16 %v176, %v175
    %v247 = vpack.c.b16 %v178, %v177
    %v248 = vpack.c.b16 %v180, %v179
    %v249 = vpack.c.b16 %v182, %v181
    %v250 = vpack.c.b16 %v184, %v183
    %v251 = vpack.c.b16 %v186, %v185
    %v252 = vpack.c.b16 %v188, %v187
    %v253 = vpack.c.b16 %v190, %v189
    %v254 = vpack.c.b16 %v192, %v191
    %v255 = vpack.c.b16 %v194, %v193
    %v256 = vpack.c.b16 %v196, %v195
    %v257 = vpack.c.b16 %v198, %v197
    %v258 = vpack.c.b16 %v200, %v199
    %v259 = vpack.c.b16 %v202, %v201
    %v260 = vpack.c.b16 %v204, %v203
    %v261 = vpack.c.b16 %v206, %v205
    %v262 = vpack.c.b16 %v208, %v207
    %v263 = vpack.c.b16 %v210, %v209
    %v264 = vpack.c.b16 %v212, %v211
    %v265 = vpack.c.b16 %v214, %v213
    %v266 = vpack.c.b16 %v216, %v215
    %v267 = vpack.c.b16 %v218, %v217
    %v268 = vpack.c.b16 %v220, %v219
    %v269 = vpack.c.b16 %v222, %v221
    %v270 = vpack.c.b16 %v224, %v223
    %v271 = vpack.c.b16 %v226, %v225
    %v272 = vpack.c.b16 %v228, %v227
    %v273 = vpack.c.b16 %v230, %v229
    %v274 = vpack.c.b16 %v232, %v231
    %v275 = vpack.c.b16 %v234, %v233
    %v276 = vpack.c.b16 %v236, %v235
    %v277 = vpack.c.b16 %v238, %v237
    %v278 = vpack.c.b16 %v240, %v239
    %v279 = vpack.c.b16 %v242, %v241
    %v280 = vpack.c.b16 %v244, %v243
    %vm281 = vcmask 195584
    %v283 = vsel %vm281, %v245, 0
    %v286 = vsel %vm281, %v246, 0
    %v289 = vsel %vm281, %v247, 0
    %v292 = vsel %vm281, %v248, 0
    %v295 = vsel %vm281, %v249, 0
    %v298 = vsel %vm281, %v250, 0
    %v301 = vsel %vm281, %v251, 0
    %v304 = vsel %vm281, %v252, 0
    %v307 = vsel %vm281, %v253, 0
    %v310 = vsel %vm281, %v254, 0
    %v313 = vsel %vm281, %v255, 0
    %v316 = vsel %vm281, %v256, 0
    %v319 = vsel %vm281, %v257, 0
    %v322 = vsel %vm281, %v258, 0
    %v325 = vsel %vm281, %v259, 0
    %v328 = vsel %vm281, %v260, 0
    %v331 = vsel %vm281, %v261, 0
    %v334 = vsel %vm281, %v262, 0
    %v337 = vsel %vm281, %v263, 0
    %v340 = vsel %vm281, %v264, 0
    %v343 = vsel %vm281, %v265, 0
    %v346 = vsel %vm281, %v266, 0
    %v349 = vsel %vm281, %v267, 0
    %v352 = vsel %vm281, %v268, 0
    %v355 = vsel %vm281, %v269, 0
    %v358 = vsel %vm281, %v270, 0
    %v361 = vsel %vm281, %v271, 0
    %v364 = vsel %vm281, %v272, 0
    %v367 = vsel %vm281, %v273, 0
    %v370 = vsel %vm281, %v274, 0
    %v373 = vsel %vm281, %v275, 0
    %v376 = vsel %vm281, %v276, 0
    %v379 = vsel %vm281, %v277, 0
    %v382 = vsel %vm281, %v278, 0
    %v385 = vsel %vm281, %v279, 0
    %v388 = vsel %vm281, %v280, 0
    %vm390 = vcmask 1043456
    %v392 = vsel %vm390, %v23, 0
    %394 = vmatprep.subr.bf16.mxu0 0
    %395 = vmatpush1.bf16.msra.mxu0 %v22
    %396 = vmatprep.subr.bf16.mxu0 0
    %397 = vmatpush1.bf16.msra.mxu0 %v392
    %398 = vmatprep.subr.bf16.mxu0 0
    %399 = vmatpush1.bf16.msra.mxu0 0
    %400 = vmatprep.subr.bf16.mxu0 0
    %401 = vmatpush1.bf16.msra.mxu0 0
    %402 = vmatprep.subr.bf16.mxu0 0
    %403 = vmatpush1.bf16.msra.mxu0 0
    %404 = vmatprep.subr.bf16.mxu0 0
    %405 = vmatpush1.bf16.msra.mxu0 0
    %406 = vmatprep.subr.bf16.mxu0 0
    %407 = vmatpush1.bf16.msra.mxu0 0
    %408 = vmatprep.subr.bf16.mxu0 0
    %409 = vmatpush1.bf16.msra.mxu0 0
    %410 = vmatprep.subr.bf16.mxu0 0
    %411 = vmatpush1.bf16.msra.mxu0 0
    %412 = vmatprep.subr.bf16.mxu0 0
    %413 = vmatpush1.bf16.msra.mxu0 0
    %414 = vmatprep.subr.bf16.mxu0 0
    %415 = vmatpush1.bf16.msra.mxu0 0
    %416 = vmatprep.subr.bf16.mxu0 0
    %417 = vmatpush1.bf16.msra.mxu0 0
    %418 = vmatprep.subr.bf16.mxu0 0
    %419 = vmatpush1.bf16.msra.mxu0 0
    %420 = vmatprep.subr.bf16.mxu0 0
    %421 = vmatpush1.bf16.msra.mxu0 0
    %422 = vmatprep.subr.bf16.mxu0 0
    %423 = vmatpush1.bf16.msra.mxu0 0
    %424 = vmatprep.subr.bf16.mxu0 0
    %425 = vmatpush1.bf16.msra.mxu0 0
    %426 = vmatprep.mubr.bf16.mxu0 0
    %427 = vmatmul.mubr.bf16.gmra.mrb[0].mxu0 %v283
    %v428 = vpop.f32.mrb[0].mxu0
    %v429 = vadd.f32 %v100, %v428
    %v430 = vpop.f32.mrb[0].mxu0
    %v431 = vpop.f32.mrb[0].mxu0
    %v432 = vadd.f32 %v100, %v431
    %v433 = vpop.f32.mrb[0].mxu0
    %434 = vmatprep.mubr.bf16.mxu0 0
    %435 = vmatmul.mubr.bf16.gmra.mrb[0].mxu0 %v286
    %v436 = vpop.f32.mrb[0].mxu0
    %v437 = vadd.f32 %v100, %v436
    %v438 = vpop.f32.mrb[0].mxu0
    %v439 = vpop.f32.mrb[0].mxu0
    %v440 = vadd.f32 %v100, %v439
    %v441 = vpop.f32.mrb[0].mxu0
    %442 = vmatprep.mubr.bf16.mxu0 0
    %443 = vmatmul.mubr.bf16.gmra.mrb[0].mxu0 %v289
    %v444 = vpop.f32.mrb[0].mxu0
    %v445 = vadd.f32 %v100, %v444
    %v446 = vpop.f32.mrb[0].mxu0
    %v447 = vpop.f32.mrb[0].mxu0
    %v448 = vadd.f32 %v100, %v447
    %v449 = vpop.f32.mrb[0].mxu0
    %450 = vmatprep.mubr.bf16.mxu0 0
    %451 = vmatmul.mubr.bf16.gmra.mrb[0].mxu0 %v292
    %v452 = vpop.f32.mrb[0].mxu0
    %v453 = vadd.f32 %v100, %v452
    %v454 = vpop.f32.mrb[0].mxu0
    %v455 = vpop.f32.mrb[0].mxu0
    %v456 = vadd.f32 %v100, %v455
    %v457 = vpop.f32.mrb[0].mxu0
    %458 = vmatprep.mubr.bf16.mxu0 0
    %459 = vmatmul.mubr.bf16.gmra.mrb[0].mxu0 %v295
    %v460 = vpop.f32.mrb[0].mxu0
    %v461 = vadd.f32 %v100, %v460
    %v462 = vpop.f32.mrb[0].mxu0
    %v463 = vpop.f32.mrb[0].mxu0
    %v464 = vadd.f32 %v100, %v463
    %v465 = vpop.f32.mrb[0].mxu0
    %466 = vmatprep.mubr.bf16.mxu0 0
    %467 = vmatmul.mubr.bf16.gmra.mrb[0].mxu0 %v298
    %v468 = vpop.f32.mrb[0].mxu0
    %v469 = vadd.f32 %v100, %v468
    %v470 = vpop.f32.mrb[0].mxu0
    %v471 = vpop.f32.mrb[0].mxu0
    %v472 = vadd.f32 %v100, %v471
    %v473 = vpop.f32.mrb[0].mxu0
    %474 = vmatprep.mubr.bf16.mxu0 0
    %475 = vmatmul.mubr.bf16.gmra.mrb[0].mxu0 %v301
    %v476 = vpop.f32.mrb[0].mxu0
    %v477 = vadd.f32 %v100, %v476
    %v478 = vpop.f32.mrb[0].mxu0
    %v479 = vpop.f32.mrb[0].mxu0
    %v480 = vadd.f32 %v100, %v479
    %v481 = vpop.f32.mrb[0].mxu0
    %482 = vmatprep.mubr.bf16.mxu0 0
    %483 = vmatmul.mubr.bf16.gmra.mrb[0].mxu0 %v304
    %v484 = vpop.f32.mrb[0].mxu0
    %v485 = vadd.f32 %v100, %v484
    %v486 = vpop.f32.mrb[0].mxu0
    %v487 = vpop.f32.mrb[0].mxu0
    %v488 = vadd.f32 %v100, %v487
    %v489 = vpop.f32.mrb[0].mxu0
    %490 = vmatprep.mubr.bf16.mxu0 0
    %491 = vmatmul.mubr.bf16.gmra.mrb[0].mxu0 %v307
    %v492 = vpop.f32.mrb[0].mxu0
    %v493 = vadd.f32 %v100, %v492
    %v494 = vpop.f32.mrb[0].mxu0
    %v495 = vpop.f32.mrb[0].mxu0
    %v496 = vadd.f32 %v100, %v495
    %v497 = vpop.f32.mrb[0].mxu0
    %498 = vmatprep.mubr.bf16.mxu0 0
    %499 = vmatmul.mubr.bf16.gmra.mrb[0].mxu0 %v310
    %v500 = vpop.f32.mrb[0].mxu0
    %v501 = vadd.f32 %v100, %v500
    %v502 = vpop.f32.mrb[0].mxu0
    %v503 = vpop.f32.mrb[0].mxu0
    %v504 = vadd.f32 %v100, %v503
    %v505 = vpop.f32.mrb[0].mxu0
    %506 = vmatprep.mubr.bf16.mxu0 0
    %507 = vmatmul.mubr.bf16.gmra.mrb[0].mxu0 %v313
    %v508 = vpop.f32.mrb[0].mxu0
    %v509 = vadd.f32 %v100, %v508
    %v510 = vpop.f32.mrb[0].mxu0
    %v511 = vpop.f32.mrb[0].mxu0
    %v512 = vadd.f32 %v100, %v511
    %v513 = vpop.f32.mrb[0].mxu0
    %514 = vmatprep.mubr.bf16.mxu0 0
    %515 = vmatmul.mubr.bf16.gmra.mrb[0].mxu0 %v316
    %v516 = vpop.f32.mrb[0].mxu0
    %v517 = vadd.f32 %v100, %v516
    %v518 = vpop.f32.mrb[0].mxu0
    %v519 = vpop.f32.mrb[0].mxu0
    %v520 = vadd.f32 %v100, %v519
    %v521 = vpop.f32.mrb[0].mxu0
    %522 = vmatprep.mubr.bf16.mxu0 0
    %523 = vmatmul.mubr.bf16.gmra.mrb[0].mxu0 %v319
    %v524 = vpop.f32.mrb[0].mxu0
    %v525 = vadd.f32 %v100, %v524
    %v526 = vpop.f32.mrb[0].mxu0
    %v527 = vpop.f32.mrb[0].mxu0
    %v528 = vadd.f32 %v100, %v527
    %v529 = vpop.f32.mrb[0].mxu0
    %530 = vmatprep.mubr.bf16.mxu0 0
    %531 = vmatmul.mubr.bf16.gmra.mrb[0].mxu0 %v322
    %v532 = vpop.f32.mrb[0].mxu0
    %v533 = vadd.f32 %v100, %v532
    %v534 = vpop.f32.mrb[0].mxu0
    %v535 = vpop.f32.mrb[0].mxu0
    %v536 = vadd.f32 %v100, %v535
    %v537 = vpop.f32.mrb[0].mxu0
    %538 = vmatprep.mubr.bf16.mxu0 0
    %539 = vmatmul.mubr.bf16.gmra.mrb[0].mxu0 %v325
    %v540 = vpop.f32.mrb[0].mxu0
    %v541 = vadd.f32 %v100, %v540
    %v542 = vpop.f32.mrb[0].mxu0
    %v543 = vpop.f32.mrb[0].mxu0
    %v544 = vadd.f32 %v100, %v543
    %v545 = vpop.f32.mrb[0].mxu0
    %546 = vmatprep.mubr.bf16.mxu0 0
    %547 = vmatmul.mubr.bf16.gmra.mrb[0].mxu0 %v328
    %v548 = vpop.f32.mrb[0].mxu0
    %v549 = vadd.f32 %v100, %v548
    %v550 = vpop.f32.mrb[0].mxu0
    %v551 = vpop.f32.mrb[0].mxu0
    %v552 = vadd.f32 %v100, %v551
    %v553 = vpop.f32.mrb[0].mxu0
    %554 = vmatprep.mubr.bf16.mxu0 0
    %555 = vmatmul.mubr.bf16.gmra.mrb[0].mxu0 %v331
    %v556 = vpop.f32.mrb[0].mxu0
    %v557 = vadd.f32 %v100, %v556
    %v558 = vpop.f32.mrb[0].mxu0
    %v559 = vpop.f32.mrb[0].mxu0
    %v560 = vadd.f32 %v100, %v559
    %v561 = vpop.f32.mrb[0].mxu0
    %562 = vmatprep.mubr.bf16.mxu0 0
    %563 = vmatmul.mubr.bf16.gmra.mrb[0].mxu0 %v334
    %v564 = vpop.f32.mrb[0].mxu0
    %v565 = vadd.f32 %v100, %v564
    %v566 = vpop.f32.mrb[0].mxu0
    %v567 = vpop.f32.mrb[0].mxu0
    %v568 = vadd.f32 %v100, %v567
    %v569 = vpop.f32.mrb[0].mxu0
    %570 = vmatprep.mubr.bf16.mxu0 0
    %571 = vmatmul.mubr.bf16.gmra.mrb[0].mxu0 %v337
    %v572 = vpop.f32.mrb[0].mxu0
    %v573 = vadd.f32 %v100, %v572
    %v574 = vpop.f32.mrb[0].mxu0
    %v575 = vpop.f32.mrb[0].mxu0
    %v576 = vadd.f32 %v100, %v575
    %v577 = vpop.f32.mrb[0].mxu0
    %578 = vmatprep.mubr.bf16.mxu0 0
    %579 = vmatmul.mubr.bf16.gmra.mrb[0].mxu0 %v340
    %v580 = vpop.f32.mrb[0].mxu0
    %v581 = vadd.f32 %v100, %v580
    %v582 = vpop.f32.mrb[0].mxu0
    %v583 = vpop.f32.mrb[0].mxu0
    %v584 = vadd.f32 %v100, %v583
    %v585 = vpop.f32.mrb[0].mxu0
    %586 = vmatprep.mubr.bf16.mxu0 0
    %587 = vmatmul.mubr.bf16.gmra.mrb[0].mxu0 %v343
    %v588 = vpop.f32.mrb[0].mxu0
    %v589 = vadd.f32 %v100, %v588
    %v590 = vpop.f32.mrb[0].mxu0
    %v591 = vpop.f32.mrb[0].mxu0
    %v592 = vadd.f32 %v100, %v591
    %v593 = vpop.f32.mrb[0].mxu0
    %594 = vmatprep.mubr.bf16.mxu0 0
    %595 = vmatmul.mubr.bf16.gmra.mrb[0].mxu0 %v346
    %v596 = vpop.f32.mrb[0].mxu0
    %v597 = vadd.f32 %v100, %v596
    %v598 = vpop.f32.mrb[0].mxu0
    %v599 = vpop.f32.mrb[0].mxu0
    %v600 = vadd.f32 %v100, %v599
    %v601 = vpop.f32.mrb[0].mxu0
    %602 = vmatprep.mubr.bf16.mxu0 0
    %603 = vmatmul.mubr.bf16.gmra.mrb[0].mxu0 %v349
    %v604 = vpop.f32.mrb[0].mxu0
    %v605 = vadd.f32 %v100, %v604
    %v606 = vpop.f32.mrb[0].mxu0
    %v607 = vpop.f32.mrb[0].mxu0
    %v608 = vadd.f32 %v100, %v607
    %v609 = vpop.f32.mrb[0].mxu0
    %610 = vmatprep.mubr.bf16.mxu0 0
    %611 = vmatmul.mubr.bf16.gmra.mrb[0].mxu0 %v352
    %v612 = vpop.f32.mrb[0].mxu0
    %v613 = vadd.f32 %v100, %v612
    %v614 = vpop.f32.mrb[0].mxu0
    %v615 = vpop.f32.mrb[0].mxu0
    %v616 = vadd.f32 %v100, %v615
    %v617 = vpop.f32.mrb[0].mxu0
    %618 = vmatprep.mubr.bf16.mxu0 0
    %619 = vmatmul.mubr.bf16.gmra.mrb[0].mxu0 %v355
    %v620 = vpop.f32.mrb[0].mxu0
    %v621 = vadd.f32 %v100, %v620
    %v622 = vpop.f32.mrb[0].mxu0
    %v623 = vpop.f32.mrb[0].mxu0
    %v624 = vadd.f32 %v100, %v623
    %v625 = vpop.f32.mrb[0].mxu0
    %626 = vmatprep.mubr.bf16.mxu0 0
    %627 = vmatmul.mubr.bf16.gmra.mrb[0].mxu0 %v358
    %v628 = vpop.f32.mrb[0].mxu0
    %v629 = vadd.f32 %v100, %v628
    %v630 = vpop.f32.mrb[0].mxu0
    %v631 = vpop.f32.mrb[0].mxu0
    %v632 = vadd.f32 %v100, %v631
    %v633 = vpop.f32.mrb[0].mxu0
    %634 = vmatprep.mubr.bf16.mxu0 0
    %635 = vmatmul.mubr.bf16.gmra.mrb[0].mxu0 %v361
    %v636 = vpop.f32.mrb[0].mxu0
    %v637 = vadd.f32 %v100, %v636
    %v638 = vpop.f32.mrb[0].mxu0
    %v639 = vpop.f32.mrb[0].mxu0
    %v640 = vadd.f32 %v100, %v639
    %v641 = vpop.f32.mrb[0].mxu0
    %642 = vmatprep.mubr.bf16.mxu0 0
    %643 = vmatmul.mubr.bf16.gmra.mrb[0].mxu0 %v364
    %v644 = vpop.f32.mrb[0].mxu0
    %v645 = vadd.f32 %v100, %v644
    %v646 = vpop.f32.mrb[0].mxu0
    %v647 = vpop.f32.mrb[0].mxu0
    %v648 = vadd.f32 %v100, %v647
    %v649 = vpop.f32.mrb[0].mxu0
    %650 = vmatprep.mubr.bf16.mxu0 0
    %651 = vmatmul.mubr.bf16.gmra.mrb[0].mxu0 %v367
    %v652 = vpop.f32.mrb[0].mxu0
    %v653 = vadd.f32 %v100, %v652
    %v654 = vpop.f32.mrb[0].mxu0
    %v655 = vpop.f32.mrb[0].mxu0
    %v656 = vadd.f32 %v100, %v655
    %v657 = vpop.f32.mrb[0].mxu0
    %658 = vmatprep.mubr.bf16.mxu0 0
    %659 = vmatmul.mubr.bf16.gmra.mrb[0].mxu0 %v370
    %v660 = vpop.f32.mrb[0].mxu0
    %v661 = vadd.f32 %v100, %v660
    %v662 = vpop.f32.mrb[0].mxu0
    %v663 = vpop.f32.mrb[0].mxu0
    %v664 = vadd.f32 %v100, %v663
    %v665 = vpop.f32.mrb[0].mxu0
    %666 = vmatprep.mubr.bf16.mxu0 0
    %667 = vmatmul.mubr.bf16.gmra.mrb[0].mxu0 %v373
    %v668 = vpop.f32.mrb[0].mxu0
    %v669 = vadd.f32 %v100, %v668
    %v670 = vpop.f32.mrb[0].mxu0
    %v671 = vpop.f32.mrb[0].mxu0
    %v672 = vadd.f32 %v100, %v671
    %v673 = vpop.f32.mrb[0].mxu0
    %674 = vmatprep.mubr.bf16.mxu0 0
    %675 = vmatmul.mubr.bf16.gmra.mrb[0].mxu0 %v376
    %v676 = vpop.f32.mrb[0].mxu0
    %v677 = vadd.f32 %v100, %v676
    %v678 = vpop.f32.mrb[0].mxu0
    %v679 = vpop.f32.mrb[0].mxu0
    %v680 = vadd.f32 %v100, %v679
    %v681 = vpop.f32.mrb[0].mxu0
    %682 = vmatprep.mubr.bf16.mxu0 0
    %683 = vmatmul.mubr.bf16.gmra.mrb[0].mxu0 %v379
    %v684 = vpop.f32.mrb[0].mxu0
    %v685 = vadd.f32 %v100, %v684
    %v686 = vpop.f32.mrb[0].mxu0
    %v687 = vpop.f32.mrb[0].mxu0
    %v688 = vadd.f32 %v100, %v687
    %v689 = vpop.f32.mrb[0].mxu0
    %690 = vmatprep.mubr.bf16.mxu0 0
    %691 = vmatmul.mubr.bf16.gmra.mrb[0].mxu0 %v382
    %v692 = vpop.f32.mrb[0].mxu0
    %v693 = vadd.f32 %v100, %v692
    %v694 = vpop.f32.mrb[0].mxu0
    %v695 = vpop.f32.mrb[0].mxu0
    %v696 = vadd.f32 %v100, %v695
    %v697 = vpop.f32.mrb[0].mxu0
    %698 = vmatprep.mubr.bf16.mxu0 0
    %699 = vmatmul.mubr.bf16.gmra.mrb[0].mxu0 %v385
    %v700 = vpop.f32.mrb[0].mxu0
    %v701 = vadd.f32 %v100, %v700
    %v702 = vpop.f32.mrb[0].mxu0
    %v703 = vpop.f32.mrb[0].mxu0
    %v704 = vadd.f32 %v100, %v703
    %v705 = vpop.f32.mrb[0].mxu0
    %706 = vmatprep.mubr.bf16.mxu0 0
    %707 = vmatmul.mubr.bf16.gmra.mrb[0].mxu0 %v388
    %v708 = vpop.f32.mrb[0].mxu0
    %v709 = vadd.f32 %v100, %v708
    %v710 = vpop.f32.mrb[0].mxu0
    %v711 = vpop.f32.mrb[0].mxu0
    %v712 = vadd.f32 %v100, %v711
    %v713 = vpop.f32.mrb[0].mxu0
    %714 = vdwg.mxu0
    %v715 = vmax.f32 %v429, 0.0
    %v716 = vmax.f32 %v432, 0.0
    %v717 = vmax.f32 %v437, 0.0
    %v718 = vmax.f32 %v440, 0.0
    %v719 = vmax.f32 %v445, 0.0
    %v720 = vmax.f32 %v448, 0.0
    %v721 = vmax.f32 %v453, 0.0
    %v722 = vmax.f32 %v456, 0.0
    %v723 = vmax.f32 %v461, 0.0
    %v724 = vmax.f32 %v464, 0.0
    %v725 = vmax.f32 %v469, 0.0
    %v726 = vmax.f32 %v472, 0.0
    %v727 = vmax.f32 %v477, 0.0
    %v728 = vmax.f32 %v480, 0.0
    %v729 = vmax.f32 %v485, 0.0
    %v730 = vmax.f32 %v488, 0.0
    %v731 = vmax.f32 %v493, 0.0
    %v732 = vmax.f32 %v496, 0.0
    %v733 = vmax.f32 %v501, 0.0
    %v734 = vmax.f32 %v504, 0.0
    %v735 = vmax.f32 %v509, 0.0
    %v736 = vmax.f32 %v512, 0.0
    %v737 = vmax.f32 %v517, 0.0
    %v738 = vmax.f32 %v520, 0.0
    %v739 = vmax.f32 %v525, 0.0
    %v740 = vmax.f32 %v528, 0.0
    %v741 = vmax.f32 %v533, 0.0
    %v742 = vmax.f32 %v536, 0.0
    %v743 = vmax.f32 %v541, 0.0
    %v744 = vmax.f32 %v544, 0.0
    %v745 = vmax.f32 %v549, 0.0
    %v746 = vmax.f32 %v552, 0.0
    %v747 = vmax.f32 %v557, 0.0
    %v748 = vmax.f32 %v560, 0.0
    %v749 = vmax.f32 %v565, 0.0
    %v750 = vmax.f32 %v568, 0.0
    %v751 = vmax.f32 %v573, 0.0
    %v752 = vmax.f32 %v576, 0.0
    %v753 = vmax.f32 %v581, 0.0
    %v754 = vmax.f32 %v584, 0.0
    %v755 = vmax.f32 %v589, 0.0
    %v756 = vmax.f32 %v592, 0.0
    %v757 = vmax.f32 %v597, 0.0
    %v758 = vmax.f32 %v600, 0.0
    %v759 = vmax.f32 %v605, 0.0
    %v760 = vmax.f32 %v608, 0.0
    %v761 = vmax.f32 %v613, 0.0
    %v762 = vmax.f32 %v616, 0.0
    %v763 = vmax.f32 %v621, 0.0
    %v764 = vmax.f32 %v624, 0.0
    %v765 = vmax.f32 %v629, 0.0
    %v766 = vmax.f32 %v632, 0.0
    %v767 = vmax.f32 %v637, 0.0
    %v768 = vmax.f32 %v640, 0.0
    %v769 = vmax.f32 %v645, 0.0
    %v770 = vmax.f32 %v648, 0.0
    %v771 = vmax.f32 %v653, 0.0
    %v772 = vmax.f32 %v656, 0.0
    %v773 = vmax.f32 %v661, 0.0
    %v774 = vmax.f32 %v664, 0.0
    %v775 = vmax.f32 %v669, 0.0
    %v776 = vmax.f32 %v672, 0.0
    %v777 = vmax.f32 %v677, 0.0
    %v778 = vmax.f32 %v680, 0.0
    %v779 = vmax.f32 %v685, 0.0
    %v780 = vmax.f32 %v688, 0.0
    %v781 = vmax.f32 %v693, 0.0
    %v782 = vmax.f32 %v696, 0.0
    %v783 = vmax.f32 %v701, 0.0
    %v784 = vmax.f32 %v704, 0.0
    %v785 = vmax.f32 %v709, 0.0
    %v786 = vmax.f32 %v712, 0.0
    %vm787 = vcmask 261120
    %v788 = vsel %vm787, %v715, -inf
    %v789 = vsel %vm787, %v716, -inf
    %v790 = vmax.f32 %v788, %v789
    %v791 = vsel %vm787, %v717, -inf
    %v792 = vmax.f32 %v790, %v791
    %v793 = vsel %vm787, %v718, -inf
    %v794 = vmax.f32 %v792, %v793
    %v795 = vsel %vm787, %v719, -inf
    %v796 = vmax.f32 %v794, %v795
    %v797 = vsel %vm787, %v720, -inf
    %v798 = vmax.f32 %v796, %v797
    %v799 = vsel %vm787, %v721, -inf
    %v800 = vmax.f32 %v798, %v799
    %v801 = vsel %vm787, %v722, -inf
    %v802 = vmax.f32 %v800, %v801
    %v803 = vsel %vm787, %v723, -inf
    %v804 = vmax.f32 %v802, %v803
    %v805 = vsel %vm787, %v724, -inf
    %v806 = vsel %vm787, %v725, -inf
    %v807 = vmax.f32 %v805, %v806
    %v808 = vsel %vm787, %v726, -inf
    %v809 = vmax.f32 %v807, %v808
    %v810 = vsel %vm787, %v727, -inf
    %v811 = vmax.f32 %v809, %v810
    %v812 = vsel %vm787, %v728, -inf
    %v813 = vmax.f32 %v811, %v812
    %v814 = vsel %vm787, %v729, -inf
    %v815 = vmax.f32 %v813, %v814
    %v816 = vsel %vm787, %v730, -inf
    %v817 = vmax.f32 %v815, %v816
    %v818 = vsel %vm787, %v731, -inf
    %v819 = vmax.f32 %v817, %v818
    %v820 = vsel %vm787, %v732, -inf
    %v821 = vmax.f32 %v819, %v820
    %v822 = vsel %vm787, %v733, -inf
    %v823 = vsel %vm787, %v734, -inf
    %v824 = vmax.f32 %v822, %v823
    %v825 = vsel %vm787, %v735, -inf
    %v826 = vmax.f32 %v824, %v825
    %v827 = vsel %vm787, %v736, -inf
    %v828 = vmax.f32 %v826, %v827
    %v829 = vsel %vm787, %v737, -inf
    %v830 = vmax.f32 %v828, %v829
    %v831 = vsel %vm787, %v738, -inf
    %v832 = vmax.f32 %v830, %v831
    %v833 = vsel %vm787, %v739, -inf
    %v834 = vmax.f32 %v832, %v833
    %v835 = vsel %vm787, %v740, -inf
    %v836 = vmax.f32 %v834, %v835
    %v837 = vsel %vm787, %v741, -inf
    %v838 = vmax.f32 %v836, %v837
    %v839 = vsel %vm787, %v742, -inf
    %v840 = vsel %vm787, %v743, -inf
    %v841 = vmax.f32 %v839, %v840
    %v842 = vsel %vm787, %v744, -inf
    %v843 = vmax.f32 %v841, %v842
    %v844 = vsel %vm787, %v745, -inf
    %v845 = vmax.f32 %v843, %v844
    %v846 = vsel %vm787, %v746, -inf
    %v847 = vmax.f32 %v845, %v846
    %v848 = vsel %vm787, %v747, -inf
    %v849 = vmax.f32 %v847, %v848
    %v850 = vsel %vm787, %v748, -inf
    %v851 = vmax.f32 %v849, %v850
    %v852 = vsel %vm787, %v749, -inf
    %v853 = vmax.f32 %v851, %v852
    %v854 = vsel %vm787, %v750, -inf
    %v855 = vmax.f32 %v853, %v854
    %v856 = vsel %vm787, %v751, -inf
    %v857 = vsel %vm787, %v752, -inf
    %v858 = vmax.f32 %v856, %v857
    %v859 = vsel %vm787, %v753, -inf
    %v860 = vmax.f32 %v858, %v859
    %v861 = vsel %vm787, %v754, -inf
    %v862 = vmax.f32 %v860, %v861
    %v863 = vsel %vm787, %v755, -inf
    %v864 = vmax.f32 %v862, %v863
    %v865 = vsel %vm787, %v756, -inf
    %v866 = vmax.f32 %v864, %v865
    %v867 = vsel %vm787, %v757, -inf
    %v868 = vmax.f32 %v866, %v867
    %v869 = vsel %vm787, %v758, -inf
    %v870 = vmax.f32 %v868, %v869
    %v871 = vsel %vm787, %v759, -inf
    %v872 = vmax.f32 %v870, %v871
    %v873 = vsel %vm787, %v760, -inf
    %v874 = vsel %vm787, %v761, -inf
    %v875 = vmax.f32 %v873, %v874
    %v876 = vsel %vm787, %v762, -inf
    %v877 = vmax.f32 %v875, %v876
    %v878 = vsel %vm787, %v763, -inf
    %v879 = vmax.f32 %v877, %v878
    %v880 = vsel %vm787, %v764, -inf
    %v881 = vmax.f32 %v879, %v880
    %v882 = vsel %vm787, %v765, -inf
    %v883 = vmax.f32 %v881, %v882
    %v884 = vsel %vm787, %v766, -inf
    %v885 = vmax.f32 %v883, %v884
    %v886 = vsel %vm787, %v767, -inf
    %v887 = vmax.f32 %v885, %v886
    %v888 = vsel %vm787, %v768, -inf
    %v889 = vmax.f32 %v887, %v888
    %v890 = vsel %vm787, %v769, -inf
    %v891 = vsel %vm787, %v770, -inf
    %v892 = vmax.f32 %v890, %v891
    %v893 = vsel %vm787, %v771, -inf
    %v894 = vmax.f32 %v892, %v893
    %v895 = vsel %vm787, %v772, -inf
    %v896 = vmax.f32 %v894, %v895
    %v897 = vsel %vm787, %v773, -inf
    %v898 = vmax.f32 %v896, %v897
    %v899 = vsel %vm787, %v774, -inf
    %v900 = vmax.f32 %v898, %v899
    %v901 = vsel %vm787, %v775, -inf
    %v902 = vmax.f32 %v900, %v901
    %v903 = vsel %vm787, %v776, -inf
    %v904 = vmax.f32 %v902, %v903
    %v905 = vsel %vm787, %v777, -inf
    %v906 = vmax.f32 %v904, %v905
    %v907 = vsel %vm787, %v778, -inf
    %v908 = vsel %vm787, %v779, -inf
    %v909 = vmax.f32 %v907, %v908
    %v910 = vsel %vm787, %v780, -inf
    %v911 = vmax.f32 %v909, %v910
    %v912 = vsel %vm787, %v781, -inf
    %v913 = vmax.f32 %v911, %v912
    %v914 = vsel %vm787, %v782, -inf
    %v915 = vmax.f32 %v913, %v914
    %v916 = vsel %vm787, %v783, -inf
    %v917 = vmax.f32 %v915, %v916
    %v918 = vsel %vm787, %v784, -inf
    %v919 = vmax.f32 %v917, %v918
    %v920 = vsel %vm787, %v785, -inf
    %v921 = vmax.f32 %v919, %v920
    %v922 = vsel %vm787, %v786, -inf
    %v923 = vmax.f32 %v921, %v922
    %v924 = vld [vmem:[%s2] sm:$0xff]
    %v925 = vld [vmem:[%s2 + $0x8] sm:$0xff]
    %v926 = vld [vmem:[%s2 + $0x10] sm:$0xff]
    %v927 = vld [vmem:[%s2 + $0x18] sm:$0xff]
    %v928 = vld [vmem:[%s2 + $0x20] sm:$0xff]
    %v929 = vld [vmem:[%s2 + $0x28] sm:$0xff]
    %v930 = vld [vmem:[%s2 + $0x30] sm:$0xff]
    %v931 = vld [vmem:[%s2 + $0x38] sm:$0xff]
    %v932 = vpack.c.bf16 %v926, %v924
    %v933 = vpack.c.bf16 %v927, %v925
    %v934 = vpack.c.bf16 %v930, %v928
    %v935 = vpack.c.bf16 %v931, %v929
    %s936 = scalar_lea.vmem %s2, 64
    %v937 = vld [vmem:[%s936] ss:$8 sm:$0x3]
    %v938 = vld [vmem:[%s2 + $0x50] sm:$0xff]
    %v939 = vld [vmem:[%s2 + $0x58] sm:$0xff]
    %v940 = vld [vmem:[%s2 + $0x60] sm:$0xff]
    %v941 = vld [vmem:[%s2 + $0x68] sm:$0xff]
    %v942 = vld [vmem:[%s2 + $0x70] sm:$0xff]
    %v943 = vld [vmem:[%s2 + $0x78] sm:$0xff]
    %v944 = vld [vmem:[%s2 + $0x80] sm:$0xff]
    %v945 = vld [vmem:[%s2 + $0x88] sm:$0xff]
    %v946 = vld [vmem:[%s2 + $0x90] sm:$0xff]
    %v947 = vld [vmem:[%s2 + $0x98] sm:$0xff]
    %v948 = vld [vmem:[%s2 + $0xa0] sm:$0xff]
    %v949 = vld [vmem:[%s2 + $0xa8] sm:$0xff]
    %v950 = vld [vmem:[%s2 + $0xb0] sm:$0xff]
    %v951 = vld [vmem:[%s2 + $0xb8] sm:$0xff]
    %v952 = vld [vmem:[%s2 + $0xc0] sm:$0xff]
    %v953 = vld [vmem:[%s2 + $0xc8] sm:$0xff]
    %v954 = vpack.c.bf16 %v940, %v938
    %v955 = vpack.c.bf16 %v941, %v939
    %v956 = vpack.c.bf16 %v944, %v942
    %v957 = vpack.c.bf16 %v945, %v943
    %v958 = vpack.c.bf16 %v948, %v946
    %v959 = vpack.c.bf16 %v949, %v947
    %v960 = vpack.c.bf16 %v952, %v950
    %v961 = vpack.c.bf16 %v953, %v951
    %v962 = vpack.c.bf16 %v821, %v804
    %v963 = vpack.c.bf16 %v855, %v838
    %v964 = vpack.c.bf16 %v889, %v872
    %v965 = vpack.c.bf16 %v923, %v906
    %v967 = vlaneseq
    %v968 = vshrl.u32 %v967, 7
    %v969 = vsub.s32 0, %v968
    %v970 = vrot.slane %v937, %v969
    %v971 = vlaneseq
    %v972 = vshrl.u32 %v971, 7
    %v973 = vsub.s32 1, %v972
    %v974 = vrot.slane %v937, %v973
    %v978 = vsel %vm787, %v962, 0
    %v981 = vsel %vm787, %v963, 0
    %v984 = vsel %vm787, %v964, 0
    %v987 = vsel %vm787, %v965, 0
    %989 = vmatprep.subr.bf16.mxu0 %v933
    %990 = vmatpush1.bf16.msra.mxu0 %v932
    %991 = vmatprep.subr.bf16.mxu0 %v935
    %992 = vmatpush1.bf16.msra.mxu0 %v934
    %993 = vmatprep.subr.bf16.mxu0 0
    %994 = vmatpush1.bf16.msra.mxu0 0
    %995 = vmatprep.subr.bf16.mxu0 0
    %996 = vmatpush1.bf16.msra.mxu0 0
    %997 = vmatprep.subr.bf16.mxu0 0
    %998 = vmatpush1.bf16.msra.mxu0 0
    %999 = vmatprep.subr.bf16.mxu0 0
    %1000 = vmatpush1.bf16.msra.mxu0 0
    %1001 = vmatprep.subr.bf16.mxu0 0
    %1002 = vmatpush1.bf16.msra.mxu0 0
    %1003 = vmatprep.subr.bf16.mxu0 0
    %1004 = vmatpush1.bf16.msra.mxu0 0
    %1005 = vmatprep.subr.bf16.mxu0 0
    %1006 = vmatpush1.bf16.msra.mxu0 0
    %1007 = vmatprep.subr.bf16.mxu0 0
    %1008 = vmatpush1.bf16.msra.mxu0 0
    %1009 = vmatprep.subr.bf16.mxu0 0
    %1010 = vmatpush1.bf16.msra.mxu0 0
    %1011 = vmatprep.subr.bf16.mxu0 0
    %1012 = vmatpush1.bf16.msra.mxu0 0
    %1013 = vmatprep.subr.bf16.mxu0 0
    %1014 = vmatpush1.bf16.msra.mxu0 0
    %1015 = vmatprep.subr.bf16.mxu0 0
    %1016 = vmatpush1.bf16.msra.mxu0 0
    %1017 = vmatprep.subr.bf16.mxu0 0
    %1018 = vmatpush1.bf16.msra.mxu0 0
    %1019 = vmatprep.subr.bf16.mxu0 0
    %1020 = vmatpush1.bf16.msra.mxu0 0
    %1021 = vmatprep.mubr.bf16.mxu0 0
    %1022 = vmatmul.mubr.bf16.gmra.mrb[0].mxu0 %v978
    %v1023 = vpop.f32.mrb[0].mxu0
    %v1024 = vadd.f32 %v970, %v1023
    %v1025 = vpop.f32.mrb[0].mxu0
    %v1026 = vadd.f32 %v974, %v1025
    %v1027 = vpop.f32.mrb[0].mxu0
    %v1028 = vadd.f32 %v970, %v1027
    %v1029 = vpop.f32.mrb[0].mxu0
    %v1030 = vadd.f32 %v974, %v1029
    %1031 = vmatprep.mubr.bf16.mxu0 0
    %1032 = vmatmul.mubr.bf16.gmra.mrb[0].mxu0 %v981
    %v1033 = vpop.f32.mrb[0].mxu0
    %v1034 = vadd.f32 %v970, %v1033
    %v1035 = vpop.f32.mrb[0].mxu0
    %v1036 = vadd.f32 %v974, %v1035
    %v1037 = vpop.f32.mrb[0].mxu0
    %v1038 = vadd.f32 %v970, %v1037
    %v1039 = vpop.f32.mrb[0].mxu0
    %v1040 = vadd.f32 %v974, %v1039
    %1041 = vmatprep.mubr.bf16.mxu0 0
    %1042 = vmatmul.mubr.bf16.gmra.mrb[0].mxu0 %v984
    %v1043 = vpop.f32.mrb[0].mxu0
    %v1044 = vadd.f32 %v970, %v1043
    %v1045 = vpop.f32.mrb[0].mxu0
    %v1046 = vadd.f32 %v974, %v1045
    %v1047 = vpop.f32.mrb[0].mxu0
    %v1048 = vadd.f32 %v970, %v1047
    %v1049 = vpop.f32.mrb[0].mxu0
    %v1050 = vadd.f32 %v974, %v1049
    %1051 = vmatprep.mubr.bf16.mxu0 0
    %1052 = vmatmul.mubr.bf16.gmra.mrb[0].mxu0 %v987
    %v1053 = vpop.f32.mrb[0].mxu0
    %v1054 = vadd.f32 %v970, %v1053
    %v1055 = vpop.f32.mrb[0].mxu0
    %v1056 = vadd.f32 %v974, %v1055
    %v1057 = vpop.f32.mrb[0].mxu0
    %v1058 = vadd.f32 %v970, %v1057
    %v1059 = vpop.f32.mrb[0].mxu0
    %v1060 = vadd.f32 %v974, %v1059
    %1061 = vdwg.mxu0
    %vm1062 = vcmask 523264
    %v1064 = vsel %vm1062, 0, 0
    %1066 = vmatprep.subr.bf16.mxu0 %v955
    %1067 = vmatpush1.bf16.msra.mxu0 %v954
    %1068 = vmatprep.subr.bf16.mxu0 %v957
    %1069 = vmatpush1.bf16.msra.mxu0 %v956
    %1070 = vmatprep.subr.bf16.mxu0 %v959
    %1071 = vmatpush1.bf16.msra.mxu0 %v958
    %1072 = vmatprep.subr.bf16.mxu0 %v961
    %1073 = vmatpush1.bf16.msra.mxu0 %v960
    %1074 = vmatprep.subr.bf16.mxu0 0
    %1075 = vmatpush1.bf16.msra.mxu0 0
    %1076 = vmatprep.subr.bf16.mxu0 0
    %1077 = vmatpush1.bf16.msra.mxu0 0
    %1078 = vmatprep.subr.bf16.mxu0 0
    %1079 = vmatpush1.bf16.msra.mxu0 0
    %1080 = vmatprep.subr.bf16.mxu0 0
    %1081 = vmatpush1.bf16.msra.mxu0 0
    %1082 = vmatprep.subr.bf16.mxu0 0
    %1083 = vmatpush1.bf16.msra.mxu0 0
    %1084 = vmatprep.subr.bf16.mxu0 0
    %1085 = vmatpush1.bf16.msra.mxu0 0
    %1086 = vmatprep.subr.bf16.mxu0 0
    %1087 = vmatpush1.bf16.msra.mxu0 0
    %1088 = vmatprep.subr.bf16.mxu0 0
    %1089 = vmatpush1.bf16.msra.mxu0 0
    %1090 = vmatprep.subr.bf16.mxu0 0
    %1091 = vmatpush1.bf16.msra.mxu0 0
    %1092 = vmatprep.subr.bf16.mxu0 0
    %1093 = vmatpush1.bf16.msra.mxu0 0
    %1094 = vmatprep.subr.bf16.mxu0 0
    %1095 = vmatpush1.bf16.msra.mxu0 0
    %1096 = vmatprep.subr.bf16.mxu0 0
    %1097 = vmatpush1.bf16.msra.mxu0 0
    %1098 = vmatprep.mubr.bf16.mxu0 0
    %1099 = vmatmul.mubr.bf16.gmra.mrb[0].mxu0 %v1064
    %v1100 = vpop.f32.mrb[0].mxu0
    %v1101 = vadd.f32 0.0, %v1100
    %v1102 = vpop.f32.mrb[0].mxu0
    %v1103 = vadd.f32 0.0, %v1102
    %v1104 = vpop.f32.mrb[0].mxu0
    %v1105 = vpop.f32.mrb[0].mxu0
    %1106 = vdwg.mxu0
    %v1107 = vadd.f32 %v1024, %v1101
    %v1108 = vadd.f32 %v1026, %v1103
    %v1109 = vmul.f32 %v1107, 0.5
    %v1110 = vmul.f32 %v1108, 0.5
    %v1111 = vtanh.pop %v1109
    %v1112 = vtanh.pop %v1110
    %v1113 = vmul.f32 %v1111, 0.5
    %v1114 = vmul.f32 %v1112, 0.5
    %v1115 = vadd.f32 %v1113, 0.5
    %v1116 = vadd.f32 %v1114, 0.5
    %v1117 = vtanh.pop %v1108
    %v1118 = vmul.f32 %v1115, 0.0
    %v1119 = vmul.f32 %v1115, %v1117
    %1121 = vrot.lane.b32.xlu0 %v1119, 64
    %v1122 = vpop.permute.xlu0 %1121
    %v1124 = vadd.f32 %v1118, %v1122
    %v1125 = vtanh.pop %v1124
    %v1126 = vmul.f32 %v1116, %v1125
    %v1127 = vpack.c.bf16 %v1126, %v1126
    %1129 = vrot.lane.b32.xlu0 %v1127, 64
    %v1130 = vpop.permute.xlu0 %1129
    %v1132 = vsel %vm1062, %v1130, 0
    %1134 = vmatprep.subr.bf16.mxu0 %v955
    %1135 = vmatpush1.bf16.msra.mxu0 %v954
    %1136 = vmatprep.subr.bf16.mxu0 %v957
    %1137 = vmatpush1.bf16.msra.mxu0 %v956
    %1138 = vmatprep.subr.bf16.mxu0 %v959
    %1139 = vmatpush1.bf16.msra.mxu0 %v958
    %1140 = vmatprep.subr.bf16.mxu0 %v961
    %1141 = vmatpush1.bf16.msra.mxu0 %v960
    %1142 = vmatprep.subr.bf16.mxu0 0
    %1143 = vmatpush1.bf16.msra.mxu0 0
    %1144 = vmatprep.subr.bf16.mxu0 0
    %1145 = vmatpush1.bf16.msra.mxu0 0
    %1146 = vmatprep.subr.bf16.mxu0 0
    %1147 = vmatpush1.bf16.msra.mxu0 0
    %1148 = vmatprep.subr.bf16.mxu0 0
    %1149 = vmatpush1.bf16.msra.mxu0 0
    %1150 = vmatprep.subr.bf16.mxu0 0
    %1151 = vmatpush1.bf16.msra.mxu0 0
    %1152 = vmatprep.subr.bf16.mxu0 0
    %1153 = vmatpush1.bf16.msra.mxu0 0
    %1154 = vmatprep.subr.bf16.mxu0 0
    %1155 = vmatpush1.bf16.msra.mxu0 0
    %1156 = vmatprep.subr.bf16.mxu0 0
    %1157 = vmatpush1.bf16.msra.mxu0 0
    %1158 = vmatprep.subr.bf16.mxu0 0
    %1159 = vmatpush1.bf16.msra.mxu0 0
    %1160 = vmatprep.subr.bf16.mxu0 0
    %1161 = vmatpush1.bf16.msra.mxu0 0
    %1162 = vmatprep.subr.bf16.mxu0 0
    %1163 = vmatpush1.bf16.msra.mxu0 0
    %1164 = vmatprep.subr.bf16.mxu0 0
    %1165 = vmatpush1.bf16.msra.mxu0 0
    %1166 = vmatprep.mubr.bf16.mxu0 0
    %1167 = vmatmul.mubr.bf16.gmra.mrb[0].mxu0 %v1132
    %v1168 = vpop.f32.mrb[0].mxu0
    %v1169 = vadd.f32 0.0, %v1168
    %v1170 = vpop.f32.mrb[0].mxu0
    %v1171 = vadd.f32 0.0, %v1170
    %v1172 = vpop.f32.mrb[0].mxu0
    %v1173 = vpop.f32.mrb[0].mxu0
    %1174 = vdwg.mxu0
    %v1175 = vadd.f32 %v1028, %v1169
    %v1176 = vadd.f32 %v1030, %v1171
    %v1177 = vmul.f32 %v1175, 0.5
    %v1178 = vmul.f32 %v1176, 0.5
    %v1179 = vtanh.pop %v1177
    %v1180 = vtanh.pop %v1178
    %v1181 = vmul.f32 %v1179, 0.5
    %v1182 = vmul.f32 %v1180, 0.5
    %v1183 = vadd.f32 %v1181, 0.5
    %v1184 = vadd.f32 %v1182, 0.5
    %v1185 = vtanh.pop %v1176
    %v1186 = vmul.f32 %v1183, %v1124
    %v1187 = vmul.f32 %v1183, %v1185
    %1189 = vrot.lane.b32.xlu0 %v1187, 64
    %v1190 = vpop.permute.xlu0 %1189
    %v1192 = vadd.f32 %v1186, %v1190
    %v1193 = vtanh.pop %v1192
    %v1194 = vmul.f32 %v1184, %v1193
    %v1195 = vpack.c.bf16 %v1194, %v1194
    %1197 = vrot.lane.b32.xlu0 %v1195, 64
    %v1198 = vpop.permute.xlu0 %1197
    %v1200 = vsel %vm1062, %v1198, 0
    %1202 = vmatprep.subr.bf16.mxu0 %v955
    %1203 = vmatpush1.bf16.msra.mxu0 %v954
    %1204 = vmatprep.subr.bf16.mxu0 %v957
    %1205 = vmatpush1.bf16.msra.mxu0 %v956
    %1206 = vmatprep.subr.bf16.mxu0 %v959
    %1207 = vmatpush1.bf16.msra.mxu0 %v958
    %1208 = vmatprep.subr.bf16.mxu0 %v961
    %1209 = vmatpush1.bf16.msra.mxu0 %v960
    %1210 = vmatprep.subr.bf16.mxu0 0
    %1211 = vmatpush1.bf16.msra.mxu0 0
    %1212 = vmatprep.subr.bf16.mxu0 0
    %1213 = vmatpush1.bf16.msra.mxu0 0
    %1214 = vmatprep.subr.bf16.mxu0 0
    %1215 = vmatpush1.bf16.msra.mxu0 0
    %1216 = vmatprep.subr.bf16.mxu0 0
    %1217 = vmatpush1.bf16.msra.mxu0 0
    %1218 = vmatprep.subr.bf16.mxu0 0
    %1219 = vmatpush1.bf16.msra.mxu0 0
    %1220 = vmatprep.subr.bf16.mxu0 0
    %1221 = vmatpush1.bf16.msra.mxu0 0
    %1222 = vmatprep.subr.bf16.mxu0 0
    %1223 = vmatpush1.bf16.msra.mxu0 0
    %1224 = vmatprep.subr.bf16.mxu0 0
    %1225 = vmatpush1.bf16.msra.mxu0 0
    %1226 = vmatprep.subr.bf16.mxu0 0
    %1227 = vmatpush1.bf16.msra.mxu0 0
    %1228 = vmatprep.subr.bf16.mxu0 0
    %1229 = vmatpush1.bf16.msra.mxu0 0
    %1230 = vmatprep.subr.bf16.mxu0 0
    %1231 = vmatpush1.bf16.msra.mxu0 0
    %1232 = vmatprep.subr.bf16.mxu0 0
    %1233 = vmatpush1.bf16.msra.mxu0 0
    %1234 = vmatprep.mubr.bf16.mxu0 0
    %1235 = vmatmul.mubr.bf16.gmra.mrb[0].mxu0 %v1200
    %v1236 = vpop.f32.mrb[0].mxu0
    %v1237 = vadd.f32 0.0, %v1236
    %v1238 = vpop.f32.mrb[0].mxu0
    %v1239 = vadd.f32 0.0, %v1238
    %v1240 = vpop.f32.mrb[0].mxu0
    %v1241 = vpop.f32.mrb[0].mxu0
    %1242 = vdwg.mxu0
    %v1243 = vadd.f32 %v1034, %v1237
    %v1244 = vadd.f32 %v1036, %v1239
    %v1245 = vmul.f32 %v1243, 0.5
    %v1246 = vmul.f32 %v1244, 0.5
    %v1247 = vtanh.pop %v1245
    %v1248 = vtanh.pop %v1246
    %v1249 = vmul.f32 %v1247, 0.5
    %v1250 = vmul.f32 %v1248, 0.5
    %v1251 = vadd.f32 %v1249, 0.5
    %v1252 = vadd.f32 %v1250, 0.5
    %v1253 = vtanh.pop %v1244
    %v1254 = vmul.f32 %v1251, %v1192
    %v1255 = vmul.f32 %v1251, %v1253
    %1257 = vrot.lane.b32.xlu0 %v1255, 64
    %v1258 = vpop.permute.xlu0 %1257
    %v1260 = vadd.f32 %v1254, %v1258
    %v1261 = vtanh.pop %v1260
    %v1262 = vmul.f32 %v1252, %v1261
    %v1263 = vpack.c.bf16 %v1262, %v1262
    %1265 = vrot.lane.b32.xlu0 %v1263, 64
    %v1266 = vpop.permute.xlu0 %1265
    %v1268 = vsel %vm1062, %v1266, 0
    %1270 = vmatprep.subr.bf16.mxu0 %v955
    %1271 = vmatpush1.bf16.msra.mxu0 %v954
    %1272 = vmatprep.subr.bf16.mxu0 %v957
    %1273 = vmatpush1.bf16.msra.mxu0 %v956
    %1274 = vmatprep.subr.bf16.mxu0 %v959
    %1275 = vmatpush1.bf16.msra.mxu0 %v958
    %1276 = vmatprep.subr.bf16.mxu0 %v961
    %1277 = vmatpush1.bf16.msra.mxu0 %v960
    %1278 = vmatprep.subr.bf16.mxu0 0
    %1279 = vmatpush1.bf16.msra.mxu0 0
    %1280 = vmatprep.subr.bf16.mxu0 0
    %1281 = vmatpush1.bf16.msra.mxu0 0
    %1282 = vmatprep.subr.bf16.mxu0 0
    %1283 = vmatpush1.bf16.msra.mxu0 0
    %1284 = vmatprep.subr.bf16.mxu0 0
    %1285 = vmatpush1.bf16.msra.mxu0 0
    %1286 = vmatprep.subr.bf16.mxu0 0
    %1287 = vmatpush1.bf16.msra.mxu0 0
    %1288 = vmatprep.subr.bf16.mxu0 0
    %1289 = vmatpush1.bf16.msra.mxu0 0
    %1290 = vmatprep.subr.bf16.mxu0 0
    %1291 = vmatpush1.bf16.msra.mxu0 0
    %1292 = vmatprep.subr.bf16.mxu0 0
    %1293 = vmatpush1.bf16.msra.mxu0 0
    %1294 = vmatprep.subr.bf16.mxu0 0
    %1295 = vmatpush1.bf16.msra.mxu0 0
    %1296 = vmatprep.subr.bf16.mxu0 0
    %1297 = vmatpush1.bf16.msra.mxu0 0
    %1298 = vmatprep.subr.bf16.mxu0 0
    %1299 = vmatpush1.bf16.msra.mxu0 0
    %1300 = vmatprep.subr.bf16.mxu0 0
    %1301 = vmatpush1.bf16.msra.mxu0 0
    %1302 = vmatprep.mubr.bf16.mxu0 0
    %1303 = vmatmul.mubr.bf16.gmra.mrb[0].mxu0 %v1268
    %v1304 = vpop.f32.mrb[0].mxu0
    %v1305 = vadd.f32 0.0, %v1304
    %v1306 = vpop.f32.mrb[0].mxu0
    %v1307 = vadd.f32 0.0, %v1306
    %v1308 = vpop.f32.mrb[0].mxu0
    %v1309 = vpop.f32.mrb[0].mxu0
    %1310 = vdwg.mxu0
    %v1311 = vadd.f32 %v1038, %v1305
    %v1312 = vadd.f32 %v1040, %v1307
    %v1313 = vmul.f32 %v1311, 0.5
    %v1314 = vmul.f32 %v1312, 0.5
    %v1315 = vtanh.pop %v1313
    %v1316 = vtanh.pop %v1314
    %v1317 = vmul.f32 %v1315, 0.5
    %v1318 = vmul.f32 %v1316, 0.5
    %v1319 = vadd.f32 %v1317, 0.5
    %v1320 = vadd.f32 %v1318, 0.5
    %v1321 = vtanh.pop %v1312
    %v1322 = vmul.f32 %v1319, %v1260
    %v1323 = vmul.f32 %v1319, %v1321
    %1325 = vrot.lane.b32.xlu0 %v1323, 64
    %v1326 = vpop.permute.xlu0 %1325
    %v1328 = vadd.f32 %v1322, %v1326
    %v1329 = vtanh.pop %v1328
    %v1330 = vmul.f32 %v1320, %v1329
    %v1331 = vpack.c.bf16 %v1330, %v1330
    %1333 = vrot.lane.b32.xlu0 %v1331, 64
    %v1334 = vpop.permute.xlu0 %1333
    %v1336 = vsel %vm1062, %v1334, 0
    %1338 = vmatprep.subr.bf16.mxu0 %v955
    %1339 = vmatpush1.bf16.msra.mxu0 %v954
    %1340 = vmatprep.subr.bf16.mxu0 %v957
    %1341 = vmatpush1.bf16.msra.mxu0 %v956
    %1342 = vmatprep.subr.bf16.mxu0 %v959
    %1343 = vmatpush1.bf16.msra.mxu0 %v958
    %1344 = vmatprep.subr.bf16.mxu0 %v961
    %1345 = vmatpush1.bf16.msra.mxu0 %v960
    %1346 = vmatprep.subr.bf16.mxu0 0
    %1347 = vmatpush1.bf16.msra.mxu0 0
    %1348 = vmatprep.subr.bf16.mxu0 0
    %1349 = vmatpush1.bf16.msra.mxu0 0
    %1350 = vmatprep.subr.bf16.mxu0 0
    %1351 = vmatpush1.bf16.msra.mxu0 0
    %1352 = vmatprep.subr.bf16.mxu0 0
    %1353 = vmatpush1.bf16.msra.mxu0 0
    %1354 = vmatprep.subr.bf16.mxu0 0
    %1355 = vmatpush1.bf16.msra.mxu0 0
    %1356 = vmatprep.subr.bf16.mxu0 0
    %1357 = vmatpush1.bf16.msra.mxu0 0
    %1358 = vmatprep.subr.bf16.mxu0 0
    %1359 = vmatpush1.bf16.msra.mxu0 0
    %1360 = vmatprep.subr.bf16.mxu0 0
    %1361 = vmatpush1.bf16.msra.mxu0 0
    %1362 = vmatprep.subr.bf16.mxu0 0
    %1363 = vmatpush1.bf16.msra.mxu0 0
    %1364 = vmatprep.subr.bf16.mxu0 0
    %1365 = vmatpush1.bf16.msra.mxu0 0
    %1366 = vmatprep.subr.bf16.mxu0 0
    %1367 = vmatpush1.bf16.msra.mxu0 0
    %1368 = vmatprep.subr.bf16.mxu0 0
    %1369 = vmatpush1.bf16.msra.mxu0 0
    %1370 = vmatprep.mubr.bf16.mxu0 0
    %1371 = vmatmul.mubr.bf16.gmra.mrb[0].mxu0 %v1336
    %v1372 = vpop.f32.mrb[0].mxu0
    %v1373 = vadd.f32 0.0, %v1372
    %v1374 = vpop.f32.mrb[0].mxu0
    %v1375 = vadd.f32 0.0, %v1374
    %v1376 = vpop.f32.mrb[0].mxu0
    %v1377 = vpop.f32.mrb[0].mxu0
    %1378 = vdwg.mxu0
    %v1379 = vadd.f32 %v1044, %v1373
    %v1380 = vadd.f32 %v1046, %v1375
    %v1381 = vmul.f32 %v1379, 0.5
    %v1382 = vmul.f32 %v1380, 0.5
    %v1383 = vtanh.pop %v1381
    %v1384 = vtanh.pop %v1382
    %v1385 = vmul.f32 %v1383, 0.5
    %v1386 = vmul.f32 %v1384, 0.5
    %v1387 = vadd.f32 %v1385, 0.5
    %v1388 = vadd.f32 %v1386, 0.5
    %v1389 = vtanh.pop %v1380
    %v1390 = vmul.f32 %v1387, %v1328
    %v1391 = vmul.f32 %v1387, %v1389
    %1393 = vrot.lane.b32.xlu0 %v1391, 64
    %v1394 = vpop.permute.xlu0 %1393
    %v1396 = vadd.f32 %v1390, %v1394
    %v1397 = vtanh.pop %v1396
    %v1398 = vmul.f32 %v1388, %v1397
    %v1399 = vpack.c.bf16 %v1398, %v1398
    %1401 = vrot.lane.b32.xlu0 %v1399, 64
    %v1402 = vpop.permute.xlu0 %1401
    %v1404 = vsel %vm1062, %v1402, 0
    %1406 = vmatprep.subr.bf16.mxu0 %v955
    %1407 = vmatpush1.bf16.msra.mxu0 %v954
    %1408 = vmatprep.subr.bf16.mxu0 %v957
    %1409 = vmatpush1.bf16.msra.mxu0 %v956
    %1410 = vmatprep.subr.bf16.mxu0 %v959
    %1411 = vmatpush1.bf16.msra.mxu0 %v958
    %1412 = vmatprep.subr.bf16.mxu0 %v961
    %1413 = vmatpush1.bf16.msra.mxu0 %v960
    %1414 = vmatprep.subr.bf16.mxu0 0
    %1415 = vmatpush1.bf16.msra.mxu0 0
    %1416 = vmatprep.subr.bf16.mxu0 0
    %1417 = vmatpush1.bf16.msra.mxu0 0
    %1418 = vmatprep.subr.bf16.mxu0 0
    %1419 = vmatpush1.bf16.msra.mxu0 0
    %1420 = vmatprep.subr.bf16.mxu0 0
    %1421 = vmatpush1.bf16.msra.mxu0 0
    %1422 = vmatprep.subr.bf16.mxu0 0
    %1423 = vmatpush1.bf16.msra.mxu0 0
    %1424 = vmatprep.subr.bf16.mxu0 0
    %1425 = vmatpush1.bf16.msra.mxu0 0
    %1426 = vmatprep.subr.bf16.mxu0 0
    %1427 = vmatpush1.bf16.msra.mxu0 0
    %1428 = vmatprep.subr.bf16.mxu0 0
    %1429 = vmatpush1.bf16.msra.mxu0 0
    %1430 = vmatprep.subr.bf16.mxu0 0
    %1431 = vmatpush1.bf16.msra.mxu0 0
    %1432 = vmatprep.subr.bf16.mxu0 0
    %1433 = vmatpush1.bf16.msra.mxu0 0
    %1434 = vmatprep.subr.bf16.mxu0 0
    %1435 = vmatpush1.bf16.msra.mxu0 0
    %1436 = vmatprep.subr.bf16.mxu0 0
    %1437 = vmatpush1.bf16.msra.mxu0 0
    %1438 = vmatprep.mubr.bf16.mxu0 0
    %1439 = vmatmul.mubr.bf16.gmra.mrb[0].mxu0 %v1404
    %v1440 = vpop.f32.mrb[0].mxu0
    %v1441 = vadd.f32 0.0, %v1440
    %v1442 = vpop.f32.mrb[0].mxu0
    %v1443 = vadd.f32 0.0, %v1442
    %v1444 = vpop.f32.mrb[0].mxu0
    %v1445 = vpop.f32.mrb[0].mxu0
    %1446 = vdwg.mxu0
    %v1447 = vadd.f32 %v1048, %v1441
    %v1448 = vadd.f32 %v1050, %v1443
    %v1449 = vmul.f32 %v1447, 0.5
    %v1450 = vmul.f32 %v1448, 0.5
    %v1451 = vtanh.pop %v1449
    %v1452 = vtanh.pop %v1450
    %v1453 = vmul.f32 %v1451, 0.5
    %v1454 = vmul.f32 %v1452, 0.5
    %v1455 = vadd.f32 %v1453, 0.5
    %v1456 = vadd.f32 %v1454, 0.5
    %v1457 = vtanh.pop %v1448
    %v1458 = vmul.f32 %v1455, %v1396
    %v1459 = vmul.f32 %v1455, %v1457
    %1461 = vrot.lane.b32.xlu0 %v1459, 64
    %v1462 = vpop.permute.xlu0 %1461
    %v1464 = vadd.f32 %v1458, %v1462
    %v1465 = vtanh.pop %v1464
    %v1466 = vmul.f32 %v1456, %v1465
    %v1467 = vpack.c.bf16 %v1466, %v1466
    %1469 = vrot.lane.b32.xlu0 %v1467, 64
    %v1470 = vpop.permute.xlu0 %1469
    %v1472 = vsel %vm1062, %v1470, 0
    %1474 = vmatprep.subr.bf16.mxu0 %v955
    %1475 = vmatpush1.bf16.msra.mxu0 %v954
    %1476 = vmatprep.subr.bf16.mxu0 %v957
    %1477 = vmatpush1.bf16.msra.mxu0 %v956
    %1478 = vmatprep.subr.bf16.mxu0 %v959
    %1479 = vmatpush1.bf16.msra.mxu0 %v958
    %1480 = vmatprep.subr.bf16.mxu0 %v961
    %1481 = vmatpush1.bf16.msra.mxu0 %v960
    %1482 = vmatprep.subr.bf16.mxu0 0
    %1483 = vmatpush1.bf16.msra.mxu0 0
    %1484 = vmatprep.subr.bf16.mxu0 0
    %1485 = vmatpush1.bf16.msra.mxu0 0
    %1486 = vmatprep.subr.bf16.mxu0 0
    %1487 = vmatpush1.bf16.msra.mxu0 0
    %1488 = vmatprep.subr.bf16.mxu0 0
    %1489 = vmatpush1.bf16.msra.mxu0 0
    %1490 = vmatprep.subr.bf16.mxu0 0
    %1491 = vmatpush1.bf16.msra.mxu0 0
    %1492 = vmatprep.subr.bf16.mxu0 0
    %1493 = vmatpush1.bf16.msra.mxu0 0
    %1494 = vmatprep.subr.bf16.mxu0 0
    %1495 = vmatpush1.bf16.msra.mxu0 0
    %1496 = vmatprep.subr.bf16.mxu0 0
    %1497 = vmatpush1.bf16.msra.mxu0 0
    %1498 = vmatprep.subr.bf16.mxu0 0
    %1499 = vmatpush1.bf16.msra.mxu0 0
    %1500 = vmatprep.subr.bf16.mxu0 0
    %1501 = vmatpush1.bf16.msra.mxu0 0
    %1502 = vmatprep.subr.bf16.mxu0 0
    %1503 = vmatpush1.bf16.msra.mxu0 0
    %1504 = vmatprep.subr.bf16.mxu0 0
    %1505 = vmatpush1.bf16.msra.mxu0 0
    %1506 = vmatprep.mubr.bf16.mxu0 0
    %1507 = vmatmul.mubr.bf16.gmra.mrb[0].mxu0 %v1472
    %v1508 = vpop.f32.mrb[0].mxu0
    %v1509 = vadd.f32 0.0, %v1508
    %v1510 = vpop.f32.mrb[0].mxu0
    %v1511 = vadd.f32 0.0, %v1510
    %v1512 = vpop.f32.mrb[0].mxu0
    %v1513 = vpop.f32.mrb[0].mxu0
    %1514 = vdwg.mxu0
    %v1515 = vadd.f32 %v1054, %v1509
    %v1516 = vadd.f32 %v1056, %v1511
    %v1517 = vmul.f32 %v1515, 0.5
    %v1518 = vmul.f32 %v1516, 0.5
    %v1519 = vtanh.pop %v1517
    %v1520 = vtanh.pop %v1518
    %v1521 = vmul.f32 %v1519, 0.5
    %v1522 = vmul.f32 %v1520, 0.5
    %v1523 = vadd.f32 %v1521, 0.5
    %v1524 = vadd.f32 %v1522, 0.5
    %v1525 = vtanh.pop %v1516
    %v1526 = vmul.f32 %v1523, %v1464
    %v1527 = vmul.f32 %v1523, %v1525
    %1529 = vrot.lane.b32.xlu0 %v1527, 64
    %v1530 = vpop.permute.xlu0 %1529
    %v1532 = vadd.f32 %v1526, %v1530
    %v1533 = vtanh.pop %v1532
    %v1534 = vmul.f32 %v1524, %v1533
    %v1535 = vpack.c.bf16 %v1534, %v1534
    %1537 = vrot.lane.b32.xlu0 %v1535, 64
    %v1538 = vpop.permute.xlu0 %1537
    %v1540 = vsel %vm1062, %v1538, 0
    %1542 = vmatprep.subr.bf16.mxu0 %v955
    %1543 = vmatpush1.bf16.msra.mxu0 %v954
    %1544 = vmatprep.subr.bf16.mxu0 %v957
    %1545 = vmatpush1.bf16.msra.mxu0 %v956
    %1546 = vmatprep.subr.bf16.mxu0 %v959
    %1547 = vmatpush1.bf16.msra.mxu0 %v958
    %1548 = vmatprep.subr.bf16.mxu0 %v961
    %1549 = vmatpush1.bf16.msra.mxu0 %v960
    %1550 = vmatprep.subr.bf16.mxu0 0
    %1551 = vmatpush1.bf16.msra.mxu0 0
    %1552 = vmatprep.subr.bf16.mxu0 0
    %1553 = vmatpush1.bf16.msra.mxu0 0
    %1554 = vmatprep.subr.bf16.mxu0 0
    %1555 = vmatpush1.bf16.msra.mxu0 0
    %1556 = vmatprep.subr.bf16.mxu0 0
    %1557 = vmatpush1.bf16.msra.mxu0 0
    %1558 = vmatprep.subr.bf16.mxu0 0
    %1559 = vmatpush1.bf16.msra.mxu0 0
    %1560 = vmatprep.subr.bf16.mxu0 0
    %1561 = vmatpush1.bf16.msra.mxu0 0
    %1562 = vmatprep.subr.bf16.mxu0 0
    %1563 = vmatpush1.bf16.msra.mxu0 0
    %1564 = vmatprep.subr.bf16.mxu0 0
    %1565 = vmatpush1.bf16.msra.mxu0 0
    %1566 = vmatprep.subr.bf16.mxu0 0
    %1567 = vmatpush1.bf16.msra.mxu0 0
    %1568 = vmatprep.subr.bf16.mxu0 0
    %1569 = vmatpush1.bf16.msra.mxu0 0
    %1570 = vmatprep.subr.bf16.mxu0 0
    %1571 = vmatpush1.bf16.msra.mxu0 0
    %1572 = vmatprep.subr.bf16.mxu0 0
    %1573 = vmatpush1.bf16.msra.mxu0 0
    %1574 = vmatprep.mubr.bf16.mxu0 0
    %1575 = vmatmul.mubr.bf16.gmra.mrb[0].mxu0 %v1540
    %v1576 = vpop.f32.mrb[0].mxu0
    %v1577 = vadd.f32 0.0, %v1576
    %v1578 = vpop.f32.mrb[0].mxu0
    %v1579 = vadd.f32 0.0, %v1578
    %v1580 = vpop.f32.mrb[0].mxu0
    %v1581 = vpop.f32.mrb[0].mxu0
    %1582 = vdwg.mxu0
    %v1583 = vadd.f32 %v1058, %v1577
    %v1584 = vadd.f32 %v1060, %v1579
    %v1585 = vmul.f32 %v1583, 0.5
    %v1586 = vmul.f32 %v1584, 0.5
    %v1587 = vtanh.pop %v1585
    %v1588 = vtanh.pop %v1586
    %v1589 = vmul.f32 %v1587, 0.5
    %v1590 = vmul.f32 %v1588, 0.5
    %v1591 = vadd.f32 %v1589, 0.5
    %v1592 = vadd.f32 %v1590, 0.5
    %v1593 = vtanh.pop %v1584
    %v1594 = vmul.f32 %v1591, %v1532
    %v1595 = vmul.f32 %v1591, %v1593
    %1597 = vrot.lane.b32.xlu0 %v1595, 64
    %v1598 = vpop.permute.xlu0 %1597
    %v1600 = vadd.f32 %v1594, %v1598
    %v1601 = vtanh.pop %v1600
    %v1602 = vmul.f32 %v1592, %v1601
    %v1603 = vld [vmem:[%s2 + $0xd0] sm:$0xff]
    %v1604 = vld [vmem:[%s2 + $0xd8] sm:$0xff]
    %v1605 = vld [vmem:[%s2 + $0xe0] sm:$0xff]
    %v1606 = vld [vmem:[%s2 + $0xe8] sm:$0xff]
    %v1607 = vld [vmem:[%s2 + $0xf0] sm:$0xff]
    %v1608 = vld [vmem:[%s2 + $0xf8] sm:$0xff]
    %v1609 = vld [vmem:[%s2 + $0x100] sm:$0xff]
    %v1610 = vld [vmem:[%s2 + $0x108] sm:$0xff]
    %v1611 = vpack.c.bf16 %v1605, %v1603
    %v1612 = vpack.c.bf16 %v1606, %v1604
    %v1613 = vpack.c.bf16 %v1609, %v1607
    %v1614 = vpack.c.bf16 %v1610, %v1608
    %s1615 = scalar_lea.vmem %s2, 272
    %v1616 = vld [vmem:[%s1615] ss:$8 sm:$0x3]
    %v1617 = vpack.c.bf16 %v923, %v923
    %v1619 = vlaneseq
    %v1620 = vshrl.u32 %v1619, 7
    %v1621 = vsub.s32 0, %v1620
    %v1622 = vrot.slane %v1616, %v1621
    %v1623 = vlaneseq
    %v1624 = vshrl.u32 %v1623, 7
    %v1625 = vsub.s32 1, %v1624
    %v1626 = vrot.slane %v1616, %v1625
    %v1630 = vsel %vm787, %v1617, 0
    %1632 = vmatprep.subr.bf16.mxu0 %v1612
    %1633 = vmatpush1.bf16.msra.mxu0 %v1611
    %1634 = vmatprep.subr.bf16.mxu0 %v1614
    %1635 = vmatpush1.bf16.msra.mxu0 %v1613
    %1636 = vmatprep.subr.bf16.mxu0 0
    %1637 = vmatpush1.bf16.msra.mxu0 0
    %1638 = vmatprep.subr.bf16.mxu0 0
    %1639 = vmatpush1.bf16.msra.mxu0 0
    %1640 = vmatprep.subr.bf16.mxu0 0
    %1641 = vmatpush1.bf16.msra.mxu0 0
    %1642 = vmatprep.subr.bf16.mxu0 0
    %1643 = vmatpush1.bf16.msra.mxu0 0
    %1644 = vmatprep.subr.bf16.mxu0 0
    %1645 = vmatpush1.bf16.msra.mxu0 0
    %1646 = vmatprep.subr.bf16.mxu0 0
    %1647 = vmatpush1.bf16.msra.mxu0 0
    %1648 = vmatprep.subr.bf16.mxu0 0
    %1649 = vmatpush1.bf16.msra.mxu0 0
    %1650 = vmatprep.subr.bf16.mxu0 0
    %1651 = vmatpush1.bf16.msra.mxu0 0
    %1652 = vmatprep.subr.bf16.mxu0 0
    %1653 = vmatpush1.bf16.msra.mxu0 0
    %1654 = vmatprep.subr.bf16.mxu0 0
    %1655 = vmatpush1.bf16.msra.mxu0 0
    %1656 = vmatprep.subr.bf16.mxu0 0
    %1657 = vmatpush1.bf16.msra.mxu0 0
    %1658 = vmatprep.subr.bf16.mxu0 0
    %1659 = vmatpush1.bf16.msra.mxu0 0
    %1660 = vmatprep.subr.bf16.mxu0 0
    %1661 = vmatpush1.bf16.msra.mxu0 0
    %1662 = vmatprep.subr.bf16.mxu0 0
    %1663 = vmatpush1.bf16.msra.mxu0 0
    %1664 = vmatprep.mubr.bf16.mxu0 0
    %1665 = vmatmul.mubr.bf16.gmra.mrb[0].mxu0 %v1630
    %v1666 = vpop.f32.mrb[0].mxu0
    %v1667 = vadd.f32 %v1622, %v1666
    %v1668 = vpop.f32.mrb[0].mxu0
    %v1669 = vadd.f32 %v1626, %v1668
    %v1670 = vpop.f32.mrb[0].mxu0
    %v1671 = vpop.f32.mrb[0].mxu0
    %1672 = vdwg.mxu0
    %v1673 = vmul.f32 %v1667, 0.5
    %v1674 = vmul.f32 %v1669, 0.5
    %v1675 = vtanh.pop %v1673
    %v1676 = vtanh.pop %v1674
    %v1677 = vmul.f32 %v1675, 0.5
    %v1678 = vmul.f32 %v1676, 0.5
    %v1679 = vadd.f32 %v1677, 0.5
    %v1680 = vadd.f32 %v1678, 0.5
    %v1681 = vtanh.pop %v1669
    %v1682 = vmul.f32 %v1679, %v1681
    %v1683 = vtanh.pop %v1682
    %1685 = vrot.lane.b32.xlu0 %v1683, 64
    %v1686 = vpop.permute.xlu0 %1685
    %v1688 = vmul.f32 %v1680, %v1686
    %v1689 = vld [vmem:[%s1 + $0x20] sm:$0xff]
    %v1690 = vld [vmem:[%s1 + $0x28] sm:$0xff]
    %v1691 = vld [vmem:[%s1 + $0x30] sm:$0xff]
    %v1692 = vld [vmem:[%s1 + $0x38] sm:$0xff]
    %v1693 = vld [vmem:[%s1 + $0x40] sm:$0xff]
    %v1694 = vld [vmem:[%s1 + $0x48] sm:$0xff]
    %v1695 = vld [vmem:[%s1 + $0x50] sm:$0xff]
    %v1696 = vld [vmem:[%s1 + $0x58] sm:$0xff]
    %v1697 = vpack.c.bf16 %v1690, %v1689
    %v1698 = vpack.c.bf16 %v1692, %v1691
    %v1699 = vpack.c.bf16 %v1694, %v1693
    %v1700 = vpack.c.bf16 %v1696, %v1695
    %v1701 = vld [vmem:[%s1 + $0x60] sm:$0xff]
    %v1702 = vld [vmem:[%s1 + $0x68] sm:$0xff]
    %v1703 = vld [vmem:[%s1 + $0x70] sm:$0xff]
    %v1704 = vld [vmem:[%s1 + $0x78] sm:$0xff]
    %v1705 = vld [vmem:[%s1 + $0x80] sm:$0xff]
    %v1706 = vld [vmem:[%s1 + $0x88] sm:$0xff]
    %v1707 = vld [vmem:[%s1 + $0x90] sm:$0xff]
    %v1708 = vld [vmem:[%s1 + $0x98] sm:$0xff]
    %v1709 = vpack.c.bf16 %v1702, %v1701
    %v1710 = vpack.c.bf16 %v1704, %v1703
    %v1711 = vpack.c.bf16 %v1706, %v1705
    %v1712 = vpack.c.bf16 %v1708, %v1707
    %v1713 = vld [vmem:[%s1 + $0xa0] sm:$0x1]
    %v1714 = vpack.c.bf16 %v1602, %v1602
    %v1715 = vpack.c.bf16 %v1688, %v1688
    %1717 = vrot.lane.b32.xlu0 %v1715, 64
    %v1718 = vpop.permute.xlu0 %1717
    %v1720 = vsel %vm1062, %v1718, 0
    %1722 = vmatprep.subr.bf16.mxu0 0
    %1723 = vmatpush1.bf16.msra.mxu0 %v1709
    %1724 = vmatprep.subr.bf16.mxu0 0
    %1725 = vmatpush1.bf16.msra.mxu0 %v1710
    %1726 = vmatprep.subr.bf16.mxu0 0
    %1727 = vmatpush1.bf16.msra.mxu0 %v1711
    %1728 = vmatprep.subr.bf16.mxu0 0
    %1729 = vmatpush1.bf16.msra.mxu0 %v1712
    %1730 = vmatprep.subr.bf16.mxu0 0
    %1731 = vmatpush1.bf16.msra.mxu0 0
    %1732 = vmatprep.subr.bf16.mxu0 0
    %1733 = vmatpush1.bf16.msra.mxu0 0
    %1734 = vmatprep.subr.bf16.mxu0 0
    %1735 = vmatpush1.bf16.msra.mxu0 0
    %1736 = vmatprep.subr.bf16.mxu0 0
    %1737 = vmatpush1.bf16.msra.mxu0 0
    %1738 = vmatprep.subr.bf16.mxu0 0
    %1739 = vmatpush1.bf16.msra.mxu0 0
    %1740 = vmatprep.subr.bf16.mxu0 0
    %1741 = vmatpush1.bf16.msra.mxu0 0
    %1742 = vmatprep.subr.bf16.mxu0 0
    %1743 = vmatpush1.bf16.msra.mxu0 0
    %1744 = vmatprep.subr.bf16.mxu0 0
    %1745 = vmatpush1.bf16.msra.mxu0 0
    %1746 = vmatprep.subr.bf16.mxu0 0
    %1747 = vmatpush1.bf16.msra.mxu0 0
    %1748 = vmatprep.subr.bf16.mxu0 0
    %1749 = vmatpush1.bf16.msra.mxu0 0
    %1750 = vmatprep.subr.bf16.mxu0 0
    %1751 = vmatpush1.bf16.msra.mxu0 0
    %1752 = vmatprep.subr.bf16.mxu0 0
    %1753 = vmatpush1.bf16.msra.mxu0 0
    %1754 = vmatprep.mubr.bf16.mxu0 0
    %1755 = vmatmul.mubr.bf16.gmra.mrb[0].mxu0 %v1720
    %v1756 = vpop.f32.mrb[0].mxu0
    %v1757 = vadd.f32 0.0, %v1756
    %v1758 = vpop.f32.mrb[0].mxu0
    %v1759 = vpop.f32.mrb[0].mxu0
    %v1760 = vpop.f32.mrb[0].mxu0
    %1761 = vdwg.mxu0
    %1763 = vrot.lane.b32.xlu0 %v1714, 64
    %v1764 = vpop.permute.xlu0 %1763
    %v1766 = vsel %vm1062, %v1764, 0
    %1768 = vmatprep.subr.bf16.mxu0 0
    %1769 = vmatpush1.bf16.msra.mxu0 %v1697
    %1770 = vmatprep.subr.bf16.mxu0 0
    %1771 = vmatpush1.bf16.msra.mxu0 %v1698
    %1772 = vmatprep.subr.bf16.mxu0 0
    %1773 = vmatpush1.bf16.msra.mxu0 %v1699
    %1774 = vmatprep.subr.bf16.mxu0 0
    %1775 = vmatpush1.bf16.msra.mxu0 %v1700
    %1776 = vmatprep.subr.bf16.mxu0 0
    %1777 = vmatpush1.bf16.msra.mxu0 0
    %1778 = vmatprep.subr.bf16.mxu0 0
    %1779 = vmatpush1.bf16.msra.mxu0 0
    %1780 = vmatprep.subr.bf16.mxu0 0
    %1781 = vmatpush1.bf16.msra.mxu0 0
    %1782 = vmatprep.subr.bf16.mxu0 0
    %1783 = vmatpush1.bf16.msra.mxu0 0
    %1784 = vmatprep.subr.bf16.mxu0 0
    %1785 = vmatpush1.bf16.msra.mxu0 0
    %1786 = vmatprep.subr.bf16.mxu0 0
    %1787 = vmatpush1.bf16.msra.mxu0 0
    %1788 = vmatprep.subr.bf16.mxu0 0
    %1789 = vmatpush1.bf16.msra.mxu0 0
    %1790 = vmatprep.subr.bf16.mxu0 0
    %1791 = vmatpush1.bf16.msra.mxu0 0
    %1792 = vmatprep.subr.bf16.mxu0 0
    %1793 = vmatpush1.bf16.msra.mxu0 0
    %1794 = vmatprep.subr.bf16.mxu0 0
    %1795 = vmatpush1.bf16.msra.mxu0 0
    %1796 = vmatprep.subr.bf16.mxu0 0
    %1797 = vmatpush1.bf16.msra.mxu0 0
    %1798 = vmatprep.subr.bf16.mxu0 0
    %1799 = vmatpush1.bf16.msra.mxu0 0
    %1800 = vmatprep.mubr.bf16.mxu0 0
    %1801 = vmatmul.mubr.bf16.gmra.mrb[0].mxu0 %v1766
    %v1802 = vpop.f32.mrb[0].mxu0
    %v1803 = vadd.f32 %v1757, %v1802
    %v1804 = vpop.f32.mrb[0].mxu0
    %v1805 = vpop.f32.mrb[0].mxu0
    %v1806 = vpop.f32.mrb[0].mxu0
    %1807 = vdwg.mxu0
    %v1808 = vlaneseq
    %v1809 = vshrl.u32 %v1808, 7
    %v1810 = vsub.s32 0, %v1809
    %v1811 = vrot.slane %v1713, %v1810
    %v1812 = vadd.f32 %v1803, %v1811
    %v1813 = vmax.f32 %v1812, 0.0
    %v1814 = vld [vmem:[%s3] sm:$0xff]
    %v1815 = vld [vmem:[%s3 + $0x8] sm:$0xff]
    %v1816 = vld [vmem:[%s3 + $0x10] sm:$0xff]
    %v1817 = vld [vmem:[%s3 + $0x18] sm:$0xff]
    %v1818 = vpack.c.bf16 %v1815, %v1814
    %v1819 = vpack.c.bf16 %v1817, %v1816
    %v1820 = vld [vmem:[%s3 + $0x20] sm:$0x1]
    %v1821 = vpack.c.bf16 %v1813, %v1813
    %v1822 = vlaneseq
    %v1823 = vshrl.u32 %v1822, 7
    %v1824 = vsub.s32 0, %v1823
    %v1825 = vrot.slane %v1820, %v1824
    %v1827 = vsel %vm787, %v1821, 0
    %1829 = vmatprep.subr.bf16.mxu0 0
    %1830 = vmatpush1.bf16.msra.mxu0 %v1818
    %1831 = vmatprep.subr.bf16.mxu0 0
    %1832 = vmatpush1.bf16.msra.mxu0 %v1819
    %1833 = vmatprep.subr.bf16.mxu0 0
    %1834 = vmatpush1.bf16.msra.mxu0 0
    %1835 = vmatprep.subr.bf16.mxu0 0
    %1836 = vmatpush1.bf16.msra.mxu0 0
    %1837 = vmatprep.subr.bf16.mxu0 0
    %1838 = vmatpush1.bf16.msra.mxu0 0
    %1839 = vmatprep.subr.bf16.mxu0 0
    %1840 = vmatpush1.bf16.msra.mxu0 0
    %1841 = vmatprep.subr.bf16.mxu0 0
    %1842 = vmatpush1.bf16.msra.mxu0 0
    %1843 = vmatprep.subr.bf16.mxu0 0
    %1844 = vmatpush1.bf16.msra.mxu0 0
    %1845 = vmatprep.subr.bf16.mxu0 0
    %1846 = vmatpush1.bf16.msra.mxu0 0
    %1847 = vmatprep.subr.bf16.mxu0 0
    %1848 = vmatpush1.bf16.msra.mxu0 0
    %1849 = vmatprep.subr.bf16.mxu0 0
    %1850 = vmatpush1.bf16.msra.mxu0 0
    %1851 = vmatprep.subr.bf16.mxu0 0
    %1852 = vmatpush1.bf16.msra.mxu0 0
    %1853 = vmatprep.subr.bf16.mxu0 0
    %1854 = vmatpush1.bf16.msra.mxu0 0
    %1855 = vmatprep.subr.bf16.mxu0 0
    %1856 = vmatpush1.bf16.msra.mxu0 0
    %1857 = vmatprep.subr.bf16.mxu0 0
    %1858 = vmatpush1.bf16.msra.mxu0 0
    %1859 = vmatprep.subr.bf16.mxu0 0
    %1860 = vmatpush1.bf16.msra.mxu0 0
    %1861 = vmatprep.mubr.bf16.mxu0 0
    %1862 = vmatmul.mubr.bf16.gmra.mrb[0].mxu0 %v1827
    %v1863 = vpop.f32.mrb[0].mxu0
    %v1864 = vadd.f32 %v1825, %v1863
    %v1865 = vpop.f32.mrb[0].mxu0
    %v1866 = vpop.f32.mrb[0].mxu0
    %v1867 = vpop.f32.mrb[0].mxu0
    %1868 = vdwg.mxu0
    %v1869 = vmax.f32 %v1864, 0.0
    %v1870 = vld [vmem:[%s3 + $0x28] sm:$0xff]
    %v1871 = vpack.c.bf16 %v1870, %v1870
    %v1872 = vld [vmem:[%s3 + $0x30] sm:$0x1]
    %v1873 = vpack.c.bf16 %v1869, %v1869
    %v1874 = vlaneseq
    %v1875 = vshrl.u32 %v1874, 7
    %v1876 = vsub.s32 0, %v1875
    %v1877 = vrot.slane %v1872, %v1876
    %vm1878 = vcmask 64512
    %v1880 = vsel %vm1878, %v1873, 0
    %v1883 = vsel %vm390, %v1871, 0
    %1885 = vmatprep.subr.bf16.mxu0 0
    %1886 = vmatpush1.bf16.msra.mxu0 %v1883
    %1887 = vmatprep.subr.bf16.mxu0 0
    %1888 = vmatpush1.bf16.msra.mxu0 0
    %1889 = vmatprep.subr.bf16.mxu0 0
    %1890 = vmatpush1.bf16.msra.mxu0 0
    %1891 = vmatprep.subr.bf16.mxu0 0
    %1892 = vmatpush1.bf16.msra.mxu0 0
    %1893 = vmatprep.subr.bf16.mxu0 0
    %1894 = vmatpush1.bf16.msra.mxu0 0
    %1895 = vmatprep.subr.bf16.mxu0 0
    %1896 = vmatpush1.bf16.msra.mxu0 0
    %1897 = vmatprep.subr.bf16.mxu0 0
    %1898 = vmatpush1.bf16.msra.mxu0 0
    %1899 = vmatprep.subr.bf16.mxu0 0
    %1900 = vmatpush1.bf16.msra.mxu0 0
    %1901 = vmatprep.subr.bf16.mxu0 0
    %1902 = vmatpush1.bf16.msra.mxu0 0
    %1903 = vmatprep.subr.bf16.mxu0 0
    %1904 = vmatpush1.bf16.msra.mxu0 0
    %1905 = vmatprep.subr.bf16.mxu0 0
    %1906 = vmatpush1.bf16.msra.mxu0 0
    %1907 = vmatprep.subr.bf16.mxu0 0
    %1908 = vmatpush1.bf16.msra.mxu0 0
    %1909 = vmatprep.subr.bf16.mxu0 0
    %1910 = vmatpush1.bf16.msra.mxu0 0
    %1911 = vmatprep.subr.bf16.mxu0 0
    %1912 = vmatpush1.bf16.msra.mxu0 0
    %1913 = vmatprep.subr.bf16.mxu0 0
    %1914 = vmatpush1.bf16.msra.mxu0 0
    %1915 = vmatprep.subr.bf16.mxu0 0
    %1916 = vmatpush1.bf16.msra.mxu0 0
    %1917 = vmatprep.mubr.bf16.mxu0 0
    %1918 = vmatmul.mubr.bf16.gmra.mrb[0].mxu0 %v1880
    %v1919 = vpop.f32.mrb[0].mxu0
    %v1920 = vadd.f32 %v1877, %v1919
    %v1921 = vpop.f32.mrb[0].mxu0
    %v1922 = vpop.f32.mrb[0].mxu0
    %v1923 = vpop.f32.mrb[0].mxu0
    %1924 = vdwg.mxu0
    %vm1925 = vcmask 9216
    %1926 = vst.msk [vmem:[#allocation2] sm:$0x3] %vm1925, %v1920
    // Predicated region
    $region18: #{cnn_lstm_v3_forward.1} parent=1 // pred_check
      _
    $region19: #{cnn_lstm_v3_forward.1} parent=1 // pred_check_branch
      %1928 = sbr.rel (0) target = $region21
    $region20: #{cnn_lstm_v3_forward.1} parent=1 // pred_region
      %s1930 = ssub.s32 32, 32
      %1931 = vsyncadd [#allocation3], %s1930
      %s1933 = sshll.u32 [#allocation2], 4
      %s1934 = int_to_ptr.vmem [resolvable:$true] %s1933
      %1936 = dma.vmem_to_hbm [thread:$0]  %s1934, 32, %s4, [#allocation3]
    $region21: #{cnn_lstm_v3_forward.1} parent=1 // pred_fallthru
      _
    // Predicated region
    $region22: #{cnn_lstm_v3_forward.1} parent=1 // pred_check
      _
    $region23: #{cnn_lstm_v3_forward.1} parent=1 // pred_check_branch
      %1938 = sbr.rel (0) target = $region25
    $region24: #{cnn_lstm_v3_forward.1} parent=1 // pred_region
      %1939 = dma.done [#allocation3], 32
    $region25: #{cnn_lstm_v3_forward.1} parent=1 // pred_fallthru
      _
    %1940 = vsyncpa [#allocation3], 1

</llo_original>
